<compile_context>
chip_gen: v7x
topology: tpu7x:2x2x1
jax: 0.10.0
libtpu: 0.0.40
codegen_flags: <defaults>
</compile_context>

<pallas_src>
import functools
import math

import jax
import jax.numpy as jnp
import numpy as np
from jax import lax
from jax.experimental import pallas as pl
from jax.experimental.pallas import tpu as pltpu

_NEG_INF = -1e30  # finite "minus infinity" for the running max


def _layernorm_f32(v, g, b, eps=1e-5):
    mu = jnp.mean(v, axis=-1, keepdims=True)
    c = v - mu
    var = jnp.mean(c * c, axis=-1, keepdims=True)
    return c * lax.rsqrt(var + eps) * g + b


def _split_heads(a, num_heads, dk):
    # (T, D) -> (H, T, dk): static lane slices + stack (pure relayout; with
    # production dk >= 128 these slices are tile-aligned).
    return jnp.stack([a[:, h * dk:(h + 1) * dk] for h in range(num_heads)], axis=0)


# ----------------------------------------------------------------------------
# Pallas kernel: one (batch, q-tile, kv-tile) step.
# ----------------------------------------------------------------------------
def _transformer_layer_kernel(
    xq_ref,                                  # (1, TQ, D) f32  queries / residual
    xkv_ref,                                 # (1, TK, D) f32  keys / values
    g1_ref, be1_ref,                         # LN (self-attn) gamma/beta (1, D) f32
    wq_ref, bq_ref, wk_ref, bk_ref,          # QK projections (bf16 W, f32 b)
    wv_ref, bv_ref, woh_ref, bo_ref,         # V proj + out proj (woh: (H, dk, D))
    g2_ref, be2_ref,                         # LN (ffn) gamma/beta (1, D) f32
    w1_ref, bf1_ref, w2_ref, bf2_ref,        # feed-forward (bf16 W, f32 b)
    o_ref,                                   # (1, TQ, D)
    q_sc,                                    # (H, TQ, dk) bf16  cached scaled Q
    m_sc, l_sc,                              # (H, TQ, 1)  f32   softmax stats
    acc_sc,                                  # (H, TQ, dk) f32   output accumulator
    *, num_heads,
):
    kv = pl.program_id(2)
    n_kv = pl.num_programs(2)
    H = num_heads
    D = xq_ref.shape[-1]
    dk = D // H

    # hoisted LN params (reused by init and per-KV-tile paths)
    g1 = g1_ref[0]
    be1 = be1_ref[0]

    # ---- per-(b, q-tile) init: Q projection + accumulator reset ------------
    @pl.when(kv == 0)
    def _init():
        xq = xq_ref[0]                                             # (TQ, D) f32
        zq = _layernorm_f32(xq, g1, be1).astype(jnp.bfloat16)
        q = jnp.dot(zq, wq_ref[...],
                    preferred_element_type=jnp.float32) + bq_ref[0]
        q = q * (1.0 / math.sqrt(dk))                              # fold scale into Q
        q_sc[...] = _split_heads(q, H, dk).astype(jnp.bfloat16)    # (H, TQ, dk)
        m_sc[...] = jnp.full(m_sc.shape, _NEG_INF, dtype=m_sc.dtype)
        l_sc[...] = jnp.zeros(l_sc.shape, dtype=l_sc.dtype)
        acc_sc[...] = jnp.zeros(acc_sc.shape, dtype=acc_sc.dtype)

    # ---- K/V projection for this KV tile ------------------------------------
    xkv = xkv_ref[0]                                               # (TK, D) f32
    zkv = _layernorm_f32(xkv, g1, be1).astype(jnp.bfloat16)
    k = jnp.dot(zkv, wk_ref[...], preferred_element_type=jnp.float32) + bk_ref[0]
    v = jnp.dot(zkv, wv_ref[...], preferred_element_type=jnp.float32) + bv_ref[0]
    k3 = _split_heads(k, H, dk).astype(jnp.bfloat16)               # (H, TK, dk)
    v3 = _split_heads(v, H, dk).astype(jnp.bfloat16)               # (H, TK, dk)

    # ---- batched-head attention, flash-style online softmax ----------------
    # scores: batch over heads, contract dk -> (H, TQ, TK)
    s = lax.dot_general(q_sc[...], k3, (((2,), (2,)), ((0,), (0,))),
                        preferred_element_type=jnp.float32)
    m_prev = m_sc[...]
    m_new = jnp.maximum(m_prev, jnp.max(s, axis=-1, keepdims=True))
    alpha = jnp.exp(m_prev - m_new)
    p = jnp.exp(s - m_new)                                         # (H, TQ, TK) f32
    l_sc[...] = alpha * l_sc[...] + jnp.sum(p, axis=-1, keepdims=True)
    # p @ V: batch over heads, contract TK -> (H, TQ, dk)
    pv = lax.dot_general(p.astype(jnp.bfloat16), v3, (((2,), (1,)), ((0,), (0,))),
                         preferred_element_type=jnp.float32)
    acc_sc[...] = alpha * acc_sc[...] + pv
    m_sc[...] = m_new

    # ---- finalize: out-projection, residual, pre-LN FFN, residual ----------
    @pl.when(kv == n_kv - 1)
    def _finalize():
        xq = xq_ref[0]                                             # (TQ, D) f32
        attn = acc_sc[...] * pl.reciprocal(l_sc[...], approx=True)  # (H, TQ, dk)
        # per-head (TQ,dk)x(dk,D), then sum heads -> (TQ, D)  (no lane concat)
        oh = lax.dot_general(attn.astype(jnp.bfloat16), woh_ref[...],
                             (((2,), (1,)), ((0,), (0,))),
                             preferred_element_type=jnp.float32)    # (H, TQ, D)
        attn_out = jnp.sum(oh, axis=0) + bo_ref[0]

        x1 = xq + attn_out                                         # residual (dropout=id)

        z2 = _layernorm_f32(x1, g2_ref[0], be2_ref[0]).astype(jnp.bfloat16)
        h1 = jnp.dot(z2, w1_ref[...],
                     preferred_element_type=jnp.float32) + bf1_ref[0]
        h1 = jnp.maximum(h1, 0.0)                                  # ReLU
        ff = jnp.dot(h1.astype(jnp.bfloat16), w2_ref[...],
                     preferred_element_type=jnp.float32) + bf2_ref[0]

        o_ref[0] = (x1 + ff).astype(o_ref.dtype)                   # residual (dropout=id)


# ----------------------------------------------------------------------------
# Wrapper
# ----------------------------------------------------------------------------
def transformer_layer(x, params, *, num_heads, q_tile=None, kv_tile=None):
    B, S, D = x.shape
    H = num_heads
    if D % H != 0:
        raise ValueError("d_model must be divisible by num_heads")
    dk = D // H

    TQ = q_tile if q_tile is not None else min(S, 256)
    TK = kv_tile if kv_tile is not None else min(S, 512)
    if S % TQ or S % TK:
        raise ValueError("seq len must be divisible by the q/kv tile sizes")
    if TQ != S and TQ % 8:
        raise ValueError("q tile must be a multiple of 8 (sublane) or the full seq")
    if TK != S and TK % 8:
        raise ValueError("kv tile must be a multiple of 8 (sublane) or the full seq")

    wdt = jnp.bfloat16       # matmul-operand storage (halves HBM traffic, 2x MXU)
    f32 = jnp.float32        # biases / LN params stay f32 (f32 epilogue)

    weight_args = (
        params["g1"].astype(f32), params["be1"].astype(f32),
        params["wq"].astype(wdt), params["bq"].astype(f32),
        params["wk"].astype(wdt), params["bk"].astype(f32),
        params["wv"].astype(wdt), params["bv"].astype(f32),
        params["wo"].reshape(H, dk, D).astype(wdt),  # head-major out-proj weight
        params["bo"].astype(f32),
        params["g2"].astype(f32), params["be2"].astype(f32),
        params["w1"].astype(wdt), params["bf1"].astype(f32),
        params["w2"].astype(wdt), params["bf2"].astype(f32),
    )

    def _const_spec(shape):
        zeros = (0,) * len(shape)
        return pl.BlockSpec(shape, lambda b, qi, ki, _z=zeros: _z)

    in_specs = [
        pl.BlockSpec((1, TQ, D), lambda b, qi, ki: (b, qi, 0)),   # queries / residual
        pl.BlockSpec((1, TK, D), lambda b, qi, ki: (b, ki, 0)),   # keys / values
    ] + [_const_spec(a.shape) for a in weight_args]

    out_specs = pl.BlockSpec((1, TQ, D), lambda b, qi, ki: (b, qi, 0))

    scratch_shapes = [
        pltpu.VMEM((H, TQ, dk), jnp.bfloat16),   # cached (scaled) Q
        pltpu.VMEM((H, TQ, 1), jnp.float32),     # running max m
        pltpu.VMEM((H, TQ, 1), jnp.float32),     # running denominator l
        pltpu.VMEM((H, TQ, dk), jnp.float32),    # attention output accumulator
    ]

    kernel = functools.partial(_transformer_layer_kernel, num_heads=H)

    return pl.pallas_call(
        kernel,
        out_shape=jax.ShapeDtypeStruct((B, S, D), x.dtype),
        grid_spec=pltpu.PrefetchScalarGridSpec(
            num_scalar_prefetch=0,
            grid=(B, S // TQ, S // TK),
            in_specs=in_specs,
            out_specs=out_specs,
            scratch_shapes=scratch_shapes,
        ),
        compiler_params=pltpu.CompilerParams(
            dimension_semantics=("parallel", "parallel", "arbitrary"),
            vmem_limit_bytes=64 * 1024 * 1024,
        ),
    )(x, x, *weight_args)


# ----------------------------------------------------------------------------
# Pure-JAX reference (f32, full softmax) for correctness checks.
# ----------------------------------------------------------------------------
def transformer_layer_ref(x, p, *, num_heads):
    eps = 1e-5

    def ln(v, g, b):
        mu = jnp.mean(v, axis=-1, keepdims=True)
        var = jnp.mean((v - mu) ** 2, axis=-1, keepdims=True)
        return (v - mu) / jnp.sqrt(var + eps) * g + b

    B, S, D = x.shape
    dk = D // num_heads
    z = ln(x, p["g1"][0], p["be1"][0])
    q = z @ p["wq"] + p["bq"][0]
    k = z @ p["wk"] + p["bk"][0]
    v = z @ p["wv"] + p["bv"][0]
    q = q.reshape(B, S, num_heads, dk)
    k = k.reshape(B, S, num_heads, dk)
    v = v.reshape(B, S, num_heads, dk)
    s = jnp.einsum("bqhd,bkhd->bhqk", q, k) / math.sqrt(dk)
    a = jax.nn.softmax(s, axis=-1)
    o = jnp.einsum("bhqk,bkhd->bqhd", a, v).reshape(B, S, D)
    o = o @ p["wo"] + p["bo"][0]
    x = x + o
    z = ln(x, p["g2"][0], p["be2"][0])
    h1 = jnp.maximum(z @ p["w1"] + p["bf1"][0], 0.0)
    ff = h1 @ p["w2"] + p["bf2"][0]
    return x + ff


# ----------------------------------------------------------------------------
# Main
# ----------------------------------------------------------------------------
if __name__ == "__main__":

    def run_case(B, S, D, H, Dff, q_tile, kv_tile):
        key = jax.random.PRNGKey(0)
        keys = jax.random.split(key, 16)

        def init(k, shape, scale=0.1):
            return (scale * jax.random.normal(k, shape)).astype(jnp.float32)

        params = {
            # LayerNorm (self-attn)
            "g1": jnp.ones((1, D), jnp.float32),
            "be1": jnp.zeros((1, D), jnp.float32),
            # MHA projections (weights [in, out]; biases [1, out])
            "wq": init(keys[0], (D, D)), "bq": init(keys[1], (1, D)),
            "wk": init(keys[2], (D, D)), "bk": init(keys[3], (1, D)),
            "wv": init(keys[4], (D, D)), "bv": init(keys[5], (1, D)),
            "wo": init(keys[6], (D, D)), "bo": init(keys[7], (1, D)),
            # LayerNorm (ffn)
            "g2": jnp.ones((1, D), jnp.float32),
            "be2": jnp.zeros((1, D), jnp.float32),
            # FeedForward
            "w1": init(keys[8], (D, Dff)), "bf1": init(keys[9], (1, Dff)),
            "w2": init(keys[10], (Dff, D)), "bf2": init(keys[11], (1, D)),
        }
        x = jax.random.normal(keys[12], (B, S, D), dtype=jnp.float32)

        out = transformer_layer(x, params, num_heads=H,
                                q_tile=q_tile, kv_tile=kv_tile)
        out = jax.block_until_ready(out)

        ref = transformer_layer_ref(x, params, num_heads=H)
        # bf16 matmul operands with f32 accumulation -> relaxed tolerance.
        np.testing.assert_allclose(np.asarray(out), np.asarray(ref),
                                   rtol=3e-2, atol=3e-2)

    # single-tile path (one q tile, one kv tile per batch element)
    run_case(B=2, S=8, D=32, H=4, Dff=64, q_tile=8, kv_tile=8)
    # multi-tile path: exercises the flash-style online-softmax accumulation
    run_case(B=2, S=16, D=32, H=4, Dff=64, q_tile=8, kv_tile=8)

    print("KERNEL_OK")
</pallas_src>

<mosaic_0001>
module attributes {stable_mosaic.version = 11 : i64} {
  func.func @_transformer_layer_kernel(%arg0: i32, %arg1: i32, %arg2: i32, %arg3: memref<1x8x32xf32, #tpu.memory_space<vmem>>, %arg4: memref<1x8x32xf32, #tpu.memory_space<vmem>>, %arg5: memref<1x32xf32, #tpu.memory_space<vmem>>, %arg6: memref<1x32xf32, #tpu.memory_space<vmem>>, %arg7: memref<32x32xbf16, #tpu.memory_space<vmem>>, %arg8: memref<1x32xf32, #tpu.memory_space<vmem>>, %arg9: memref<32x32xbf16, #tpu.memory_space<vmem>>, %arg10: memref<1x32xf32, #tpu.memory_space<vmem>>, %arg11: memref<32x32xbf16, #tpu.memory_space<vmem>>, %arg12: memref<1x32xf32, #tpu.memory_space<vmem>>, %arg13: memref<4x8x32xbf16, #tpu.memory_space<vmem>>, %arg14: memref<1x32xf32, #tpu.memory_space<vmem>>, %arg15: memref<1x32xf32, #tpu.memory_space<vmem>>, %arg16: memref<1x32xf32, #tpu.memory_space<vmem>>, %arg17: memref<32x64xbf16, #tpu.memory_space<vmem>>, %arg18: memref<1x64xf32, #tpu.memory_space<vmem>>, %arg19: memref<64x32xbf16, #tpu.memory_space<vmem>>, %arg20: memref<1x32xf32, #tpu.memory_space<vmem>>, %arg21: memref<1x8x32xf32, #tpu.memory_space<vmem>>, %arg22: memref<4x8x8xbf16, #tpu.memory_space<vmem>>, %arg23: memref<4x8x1xf32, #tpu.memory_space<vmem>>, %arg24: memref<4x8x1xf32, #tpu.memory_space<vmem>>, %arg25: memref<4x8x8xf32, #tpu.memory_space<vmem>>) attributes {dimension_semantics = [#tpu.dimension_semantics<parallel>, #tpu.dimension_semantics<parallel>, #tpu.dimension_semantics<arbitrary>], iteration_bounds = array<i64: 2, 1, 1>, scalar_prefetch = 0 : i64, scratch_operands = 4 : i64, tpu.core_type = #tpu.core_type<tc>, window_params = [{transform_indices = @transform_0, window_bounds = array<i64: 1, 8, 32>}, {transform_indices = @transform_1, window_bounds = array<i64: 1, 8, 32>}, {pipeline_mode = #tpu.pipeline_mode<synchronous>, transform_indices = @transform_2, window_bounds = array<i64: 1, 32>}, {pipeline_mode = #tpu.pipeline_mode<synchronous>, transform_indices = @transform_3, window_bounds = array<i64: 1, 32>}, {pipeline_mode = #tpu.pipeline_mode<synchronous>, transform_indices = @transform_4, window_bounds = array<i64: 32, 32>}, {pipeline_mode = #tpu.pipeline_mode<synchronous>, transform_indices = @transform_5, window_bounds = array<i64: 1, 32>}, {pipeline_mode = #tpu.pipeline_mode<synchronous>, transform_indices = @transform_6, window_bounds = array<i64: 32, 32>}, {pipeline_mode = #tpu.pipeline_mode<synchronous>, transform_indices = @transform_7, window_bounds = array<i64: 1, 32>}, {pipeline_mode = #tpu.pipeline_mode<synchronous>, transform_indices = @transform_8, window_bounds = array<i64: 32, 32>}, {pipeline_mode = #tpu.pipeline_mode<synchronous>, transform_indices = @transform_9, window_bounds = array<i64: 1, 32>}, {pipeline_mode = #tpu.pipeline_mode<synchronous>, transform_indices = @transform_10, window_bounds = array<i64: 4, 8, 32>}, {pipeline_mode = #tpu.pipeline_mode<synchronous>, transform_indices = @transform_11, window_bounds = array<i64: 1, 32>}, {pipeline_mode = #tpu.pipeline_mode<synchronous>, transform_indices = @transform_12, window_bounds = array<i64: 1, 32>}, {pipeline_mode = #tpu.pipeline_mode<synchronous>, transform_indices = @transform_13, window_bounds = array<i64: 1, 32>}, {pipeline_mode = #tpu.pipeline_mode<synchronous>, transform_indices = @transform_14, window_bounds = array<i64: 32, 64>}, {pipeline_mode = #tpu.pipeline_mode<synchronous>, transform_indices = @transform_15, window_bounds = array<i64: 1, 64>}, {pipeline_mode = #tpu.pipeline_mode<synchronous>, transform_indices = @transform_16, window_bounds = array<i64: 64, 32>}, {pipeline_mode = #tpu.pipeline_mode<synchronous>, transform_indices = @transform_17, window_bounds = array<i64: 1, 32>}, {transform_indices = @transform_18, window_bounds = array<i64: 1, 8, 32>}]} {
    %c0 = arith.constant 0 : index
    %c0_0 = arith.constant 0 : index
    %0 = vector.load %arg5[%c0, %c0_0] : memref<1x32xf32, #tpu.memory_space<vmem>>, vector<1x32xf32>
    %1 = vector.shape_cast %0 : vector<1x32xf32> to vector<32xf32>
    %c0_1 = arith.constant 0 : index
    %c0_2 = arith.constant 0 : index
    %2 = vector.load %arg6[%c0_1, %c0_2] : memref<1x32xf32, #tpu.memory_space<vmem>>, vector<1x32xf32>
    %3 = vector.shape_cast %2 : vector<1x32xf32> to vector<32xf32>
    %c0_i32 = arith.constant 0 : i32
    %4 = arith.cmpi eq, %arg2, %c0_i32 : i32
    %5 = arith.extui %4 : i1 to i32
    %c0_i32_3 = arith.constant 0 : i32
    %6 = arith.cmpi ne, %5, %c0_i32_3 : i32
    scf.if %6 {
      %c0_48 = arith.constant 0 : index
      %c0_49 = arith.constant 0 : index
      %c0_50 = arith.constant 0 : index
      %94 = vector.load %arg3[%c0_48, %c0_49, %c0_50] : memref<1x8x32xf32, #tpu.memory_space<vmem>>, vector<1x8x32xf32>
      %95 = vector.shape_cast %94 : vector<1x8x32xf32> to vector<8x32xf32>
      %cst_51 = arith.constant dense<0.000000e+00> : vector<8xf32>
      %96 = vector.multi_reduction <add>, %95, %cst_51 [1] : vector<8x32xf32> to vector<8xf32>
      %97 = vector.shape_cast %96 : vector<8xf32> to vector<8x1xf32>
      %cst_52 = arith.constant 3.200000e+01 : f32
      %98 = vector.broadcast %cst_52 : f32 to vector<8x1xf32>
      %99 = arith.divf %97, %98 : vector<8x1xf32>
      %100 = vector.broadcast %99 : vector<8x1xf32> to vector<8x32xf32>
      %101 = arith.subf %95, %100 : vector<8x32xf32>
      %102 = arith.mulf %101, %101 : vector<8x32xf32>
      %cst_53 = arith.constant dense<0.000000e+00> : vector<8xf32>
      %103 = vector.multi_reduction <add>, %102, %cst_53 [1] : vector<8x32xf32> to vector<8xf32>
      %104 = vector.shape_cast %103 : vector<8xf32> to vector<8x1xf32>
      %cst_54 = arith.constant 3.200000e+01 : f32
      %105 = vector.broadcast %cst_54 : f32 to vector<8x1xf32>
      %106 = arith.divf %104, %105 : vector<8x1xf32>
      %cst_55 = arith.constant 9.99999974E-6 : f32
      %107 = vector.broadcast %cst_55 : f32 to vector<8x1xf32>
      %108 = arith.addf %106, %107 : vector<8x1xf32>
      %109 = math.rsqrt %108 : vector<8x1xf32>
      %110 = vector.broadcast %109 : vector<8x1xf32> to vector<8x32xf32>
      %111 = arith.mulf %101, %110 : vector<8x32xf32>
      %112 = vector.shape_cast %1 : vector<32xf32> to vector<1x32xf32>
      %113 = vector.broadcast %112 : vector<1x32xf32> to vector<8x32xf32>
      %114 = arith.mulf %111, %113 : vector<8x32xf32>
      %115 = vector.shape_cast %3 : vector<32xf32> to vector<1x32xf32>
      %116 = vector.broadcast %115 : vector<1x32xf32> to vector<8x32xf32>
      %117 = arith.addf %114, %116 : vector<8x32xf32>
      %118 = arith.truncf %117 : vector<8x32xf32> to vector<8x32xbf16>
      %c0_56 = arith.constant 0 : index
      %c0_57 = arith.constant 0 : index
      %119 = vector.load %arg7[%c0_56, %c0_57] : memref<32x32xbf16, #tpu.memory_space<vmem>>, vector<32x32xbf16>
      %cst_58 = arith.constant dense<0.000000e+00> : vector<8x32xf32>
      %120 = tpu.matmul %118, %119, %cst_58 {dimension_numbers = #tpu.dot_dimension_numbers<[1], [0], [0], [1], [0, 0, 1, 1], [], []>} : vector<8x32xbf16>, vector<32x32xbf16>, vector<8x32xf32> -> vector<8x32xf32>
      %c0_59 = arith.constant 0 : index
      %c0_60 = arith.constant 0 : index
      %121 = vector.load %arg8[%c0_59, %c0_60] : memref<1x32xf32, #tpu.memory_space<vmem>>, vector<1x32xf32>
      %122 = vector.shape_cast %121 : vector<1x32xf32> to vector<32xf32>
      %123 = vector.shape_cast %122 : vector<32xf32> to vector<1x32xf32>
      %124 = vector.broadcast %123 : vector<1x32xf32> to vector<8x32xf32>
      %125 = arith.addf %120, %124 : vector<8x32xf32>
      %cst_61 = arith.constant 0.353553385 : f32
      %126 = vector.broadcast %cst_61 : f32 to vector<8x32xf32>
      %127 = arith.mulf %125, %126 : vector<8x32xf32>
      %128 = vector.extract_strided_slice %127 {offsets = [0, 0], sizes = [8, 8], strides = [1, 1]} : vector<8x32xf32> to vector<8x8xf32>
      %129 = vector.extract_strided_slice %127 {offsets = [0, 8], sizes = [8, 8], strides = [1, 1]} : vector<8x32xf32> to vector<8x8xf32>
      %130 = vector.extract_strided_slice %127 {offsets = [0, 16], sizes = [8, 8], strides = [1, 1]} : vector<8x32xf32> to vector<8x8xf32>
      %131 = vector.extract_strided_slice %127 {offsets = [0, 24], sizes = [8, 8], strides = [1, 1]} : vector<8x32xf32> to vector<8x8xf32>
      %132 = vector.shape_cast %128 : vector<8x8xf32> to vector<1x8x8xf32>
      %133 = vector.shape_cast %129 : vector<8x8xf32> to vector<1x8x8xf32>
      %134 = vector.shape_cast %130 : vector<8x8xf32> to vector<1x8x8xf32>
      %135 = vector.shape_cast %131 : vector<8x8xf32> to vector<1x8x8xf32>
      %136 = tpu.concatenate %132, %133, %134, %135 in 0 : vector<1x8x8xf32>, vector<1x8x8xf32>, vector<1x8x8xf32>, vector<1x8x8xf32> -> vector<4x8x8xf32>
      %137 = arith.truncf %136 : vector<4x8x8xf32> to vector<4x8x8xbf16>
      %c0_62 = arith.constant 0 : index
      %c0_63 = arith.constant 0 : index
      %c0_64 = arith.constant 0 : index
      %138 = vector.load %arg22[%c0_62, %c0_63, %c0_64] : memref<4x8x8xbf16, #tpu.memory_space<vmem>>, vector<4x8x8xbf16>
      tpu.vector_store %arg22[%c0_62, %c0_63, %c0_64], %137 {strides = array<i32>} : memref<4x8x8xbf16, #tpu.memory_space<vmem>>, vector<4x8x8xbf16>,
      %cst_65 = arith.constant -1.000000e+30 : f32
      %139 = vector.broadcast %cst_65 : f32 to vector<4x8x1xf32>
      %c0_66 = arith.constant 0 : index
      %c0_67 = arith.constant 0 : index
      %c0_68 = arith.constant 0 : index
      %140 = vector.load %arg23[%c0_66, %c0_67, %c0_68] : memref<4x8x1xf32, #tpu.memory_space<vmem>>, vector<4x8x1xf32>
      tpu.vector_store %arg23[%c0_66, %c0_67, %c0_68], %139 {strides = array<i32>} : memref<4x8x1xf32, #tpu.memory_space<vmem>>, vector<4x8x1xf32>,
      %cst_69 = arith.constant 0.000000e+00 : f32
      %141 = vector.broadcast %cst_69 : f32 to vector<4x8x1xf32>
      %c0_70 = arith.constant 0 : index
      %c0_71 = arith.constant 0 : index
      %c0_72 = arith.constant 0 : index
      %142 = vector.load %arg24[%c0_70, %c0_71, %c0_72] : memref<4x8x1xf32, #tpu.memory_space<vmem>>, vector<4x8x1xf32>
      tpu.vector_store %arg24[%c0_70, %c0_71, %c0_72], %141 {strides = array<i32>} : memref<4x8x1xf32, #tpu.memory_space<vmem>>, vector<4x8x1xf32>,
      %cst_73 = arith.constant 0.000000e+00 : f32
      %143 = vector.broadcast %cst_73 : f32 to vector<4x8x8xf32>
      %c0_74 = arith.constant 0 : index
      %c0_75 = arith.constant 0 : index
      %c0_76 = arith.constant 0 : index
      %144 = vector.load %arg25[%c0_74, %c0_75, %c0_76] : memref<4x8x8xf32, #tpu.memory_space<vmem>>, vector<4x8x8xf32>
      tpu.vector_store %arg25[%c0_74, %c0_75, %c0_76], %143 {strides = array<i32>} : memref<4x8x8xf32, #tpu.memory_space<vmem>>, vector<4x8x8xf32>,
    } else {
    }
    %c0_4 = arith.constant 0 : index
    %c0_5 = arith.constant 0 : index
    %c0_6 = arith.constant 0 : index
    %7 = vector.load %arg4[%c0_4, %c0_5, %c0_6] : memref<1x8x32xf32, #tpu.memory_space<vmem>>, vector<1x8x32xf32>
    %8 = vector.shape_cast %7 : vector<1x8x32xf32> to vector<8x32xf32>
    %cst = arith.constant dense<0.000000e+00> : vector<8xf32>
    %9 = vector.multi_reduction <add>, %8, %cst [1] : vector<8x32xf32> to vector<8xf32>
    %10 = vector.shape_cast %9 : vector<8xf32> to vector<8x1xf32>
    %cst_7 = arith.constant 3.200000e+01 : f32
    %11 = vector.broadcast %cst_7 : f32 to vector<8x1xf32>
    %12 = arith.divf %10, %11 : vector<8x1xf32>
    %13 = vector.broadcast %12 : vector<8x1xf32> to vector<8x32xf32>
    %14 = arith.subf %8, %13 : vector<8x32xf32>
    %15 = arith.mulf %14, %14 : vector<8x32xf32>
    %cst_8 = arith.constant dense<0.000000e+00> : vector<8xf32>
    %16 = vector.multi_reduction <add>, %15, %cst_8 [1] : vector<8x32xf32> to vector<8xf32>
    %17 = vector.shape_cast %16 : vector<8xf32> to vector<8x1xf32>
    %cst_9 = arith.constant 3.200000e+01 : f32
    %18 = vector.broadcast %cst_9 : f32 to vector<8x1xf32>
    %19 = arith.divf %17, %18 : vector<8x1xf32>
    %cst_10 = arith.constant 9.99999974E-6 : f32
    %20 = vector.broadcast %cst_10 : f32 to vector<8x1xf32>
    %21 = arith.addf %19, %20 : vector<8x1xf32>
    %22 = math.rsqrt %21 : vector<8x1xf32>
    %23 = vector.broadcast %22 : vector<8x1xf32> to vector<8x32xf32>
    %24 = arith.mulf %14, %23 : vector<8x32xf32>
    %25 = vector.shape_cast %1 : vector<32xf32> to vector<1x32xf32>
    %26 = vector.broadcast %25 : vector<1x32xf32> to vector<8x32xf32>
    %27 = arith.mulf %24, %26 : vector<8x32xf32>
    %28 = vector.shape_cast %3 : vector<32xf32> to vector<1x32xf32>
    %29 = vector.broadcast %28 : vector<1x32xf32> to vector<8x32xf32>
    %30 = arith.addf %27, %29 : vector<8x32xf32>
    %31 = arith.truncf %30 : vector<8x32xf32> to vector<8x32xbf16>
    %c0_11 = arith.constant 0 : index
    %c0_12 = arith.constant 0 : index
    %32 = vector.load %arg9[%c0_11, %c0_12] : memref<32x32xbf16, #tpu.memory_space<vmem>>, vector<32x32xbf16>
    %cst_13 = arith.constant dense<0.000000e+00> : vector<8x32xf32>
    %33 = tpu.matmul %31, %32, %cst_13 {dimension_numbers = #tpu.dot_dimension_numbers<[1], [0], [0], [1], [0, 0, 1, 1], [], []>} : vector<8x32xbf16>, vector<32x32xbf16>, vector<8x32xf32> -> vector<8x32xf32>
    %c0_14 = arith.constant 0 : index
    %c0_15 = arith.constant 0 : index
    %34 = vector.load %arg10[%c0_14, %c0_15] : memref<1x32xf32, #tpu.memory_space<vmem>>, vector<1x32xf32>
    %35 = vector.shape_cast %34 : vector<1x32xf32> to vector<32xf32>
    %36 = vector.shape_cast %35 : vector<32xf32> to vector<1x32xf32>
    %37 = vector.broadcast %36 : vector<1x32xf32> to vector<8x32xf32>
    %38 = arith.addf %33, %37 : vector<8x32xf32>
    %c0_16 = arith.constant 0 : index
    %c0_17 = arith.constant 0 : index
    %39 = vector.load %arg11[%c0_16, %c0_17] : memref<32x32xbf16, #tpu.memory_space<vmem>>, vector<32x32xbf16>
    %cst_18 = arith.constant dense<0.000000e+00> : vector<8x32xf32>
    %40 = tpu.matmul %31, %39, %cst_18 {dimension_numbers = #tpu.dot_dimension_numbers<[1], [0], [0], [1], [0, 0, 1, 1], [], []>} : vector<8x32xbf16>, vector<32x32xbf16>, vector<8x32xf32> -> vector<8x32xf32>
    %c0_19 = arith.constant 0 : index
    %c0_20 = arith.constant 0 : index
    %41 = vector.load %arg12[%c0_19, %c0_20] : memref<1x32xf32, #tpu.memory_space<vmem>>, vector<1x32xf32>
    %42 = vector.shape_cast %41 : vector<1x32xf32> to vector<32xf32>
    %43 = vector.shape_cast %42 : vector<32xf32> to vector<1x32xf32>
    %44 = vector.broadcast %43 : vector<1x32xf32> to vector<8x32xf32>
    %45 = arith.addf %40, %44 : vector<8x32xf32>
    %46 = vector.extract_strided_slice %38 {offsets = [0, 0], sizes = [8, 8], strides = [1, 1]} : vector<8x32xf32> to vector<8x8xf32>
    %47 = vector.extract_strided_slice %38 {offsets = [0, 8], sizes = [8, 8], strides = [1, 1]} : vector<8x32xf32> to vector<8x8xf32>
    %48 = vector.extract_strided_slice %38 {offsets = [0, 16], sizes = [8, 8], strides = [1, 1]} : vector<8x32xf32> to vector<8x8xf32>
    %49 = vector.extract_strided_slice %38 {offsets = [0, 24], sizes = [8, 8], strides = [1, 1]} : vector<8x32xf32> to vector<8x8xf32>
    %50 = vector.shape_cast %46 : vector<8x8xf32> to vector<1x8x8xf32>
    %51 = vector.shape_cast %47 : vector<8x8xf32> to vector<1x8x8xf32>
    %52 = vector.shape_cast %48 : vector<8x8xf32> to vector<1x8x8xf32>
    %53 = vector.shape_cast %49 : vector<8x8xf32> to vector<1x8x8xf32>
    %54 = tpu.concatenate %50, %51, %52, %53 in 0 : vector<1x8x8xf32>, vector<1x8x8xf32>, vector<1x8x8xf32>, vector<1x8x8xf32> -> vector<4x8x8xf32>
    %55 = arith.truncf %54 : vector<4x8x8xf32> to vector<4x8x8xbf16>
    %56 = vector.extract_strided_slice %45 {offsets = [0, 0], sizes = [8, 8], strides = [1, 1]} : vector<8x32xf32> to vector<8x8xf32>
    %57 = vector.extract_strided_slice %45 {offsets = [0, 8], sizes = [8, 8], strides = [1, 1]} : vector<8x32xf32> to vector<8x8xf32>
    %58 = vector.extract_strided_slice %45 {offsets = [0, 16], sizes = [8, 8], strides = [1, 1]} : vector<8x32xf32> to vector<8x8xf32>
    %59 = vector.extract_strided_slice %45 {offsets = [0, 24], sizes = [8, 8], strides = [1, 1]} : vector<8x32xf32> to vector<8x8xf32>
    %60 = vector.shape_cast %56 : vector<8x8xf32> to vector<1x8x8xf32>
    %61 = vector.shape_cast %57 : vector<8x8xf32> to vector<1x8x8xf32>
    %62 = vector.shape_cast %58 : vector<8x8xf32> to vector<1x8x8xf32>
    %63 = vector.shape_cast %59 : vector<8x8xf32> to vector<1x8x8xf32>
    %64 = tpu.concatenate %60, %61, %62, %63 in 0 : vector<1x8x8xf32>, vector<1x8x8xf32>, vector<1x8x8xf32>, vector<1x8x8xf32> -> vector<4x8x8xf32>
    %65 = arith.truncf %64 : vector<4x8x8xf32> to vector<4x8x8xbf16>
    %c0_21 = arith.constant 0 : index
    %c0_22 = arith.constant 0 : index
    %c0_23 = arith.constant 0 : index
    %66 = vector.load %arg22[%c0_21, %c0_22, %c0_23] : memref<4x8x8xbf16, #tpu.memory_space<vmem>>, vector<4x8x8xbf16>
    %cst_24 = arith.constant dense<0.000000e+00> : vector<4x8x8xf32>
    %67 = tpu.matmul %66, %55, %cst_24 {dimension_numbers = #tpu.dot_dimension_numbers<[2], [2], [1], [1], [0, 0, 0, 1, 1, 1], [0], [0]>} : vector<4x8x8xbf16>, vector<4x8x8xbf16>, vector<4x8x8xf32> -> vector<4x8x8xf32>
    %c0_25 = arith.constant 0 : index
    %c0_26 = arith.constant 0 : index
    %c0_27 = arith.constant 0 : index
    %68 = vector.load %arg23[%c0_25, %c0_26, %c0_27] : memref<4x8x1xf32, #tpu.memory_space<vmem>>, vector<4x8x1xf32>
    %cst_28 = arith.constant dense<0xFF800000> : vector<4x8xf32>
    %69 = vector.multi_reduction <maximumf>, %67, %cst_28 [2] : vector<4x8x8xf32> to vector<4x8xf32>
    %70 = vector.shape_cast %69 : vector<4x8xf32> to vector<4x8x1xf32>
    %71 = arith.maximumf %68, %70 : vector<4x8x1xf32>
    %72 = arith.subf %68, %71 : vector<4x8x1xf32>
    %73 = math.exp %72 : vector<4x8x1xf32>
    %74 = vector.broadcast %71 : vector<4x8x1xf32> to vector<4x8x8xf32>
    %75 = arith.subf %67, %74 : vector<4x8x8xf32>
    %76 = math.exp %75 : vector<4x8x8xf32>
    %c0_29 = arith.constant 0 : index
    %c0_30 = arith.constant 0 : index
    %c0_31 = arith.constant 0 : index
    %77 = vector.load %arg24[%c0_29, %c0_30, %c0_31] : memref<4x8x1xf32, #tpu.memory_space<vmem>>, vector<4x8x1xf32>
    %78 = arith.mulf %73, %77 : vector<4x8x1xf32>
    %cst_32 = arith.constant dense<0.000000e+00> : vector<4x8xf32>
    %79 = vector.multi_reduction <add>, %76, %cst_32 [2] : vector<4x8x8xf32> to vector<4x8xf32>
    %80 = vector.shape_cast %79 : vector<4x8xf32> to vector<4x8x1xf32>
    %81 = arith.addf %78, %80 : vector<4x8x1xf32>
    %c0_33 = arith.constant 0 : index
    %c0_34 = arith.constant 0 : index
    %c0_35 = arith.constant 0 : index
    %82 = vector.load %arg24[%c0_33, %c0_34, %c0_35] : memref<4x8x1xf32, #tpu.memory_space<vmem>>, vector<4x8x1xf32>
    tpu.vector_store %arg24[%c0_33, %c0_34, %c0_35], %81 {strides = array<i32>} : memref<4x8x1xf32, #tpu.memory_space<vmem>>, vector<4x8x1xf32>,
    %83 = arith.truncf %76 : vector<4x8x8xf32> to vector<4x8x8xbf16>
    %cst_36 = arith.constant dense<0.000000e+00> : vector<4x8x8xf32>
    %84 = tpu.matmul %83, %65, %cst_36 {dimension_numbers = #tpu.dot_dimension_numbers<[2], [1], [1], [2], [0, 0, 0, 1, 1, 2], [0], [0]>} : vector<4x8x8xbf16>, vector<4x8x8xbf16>, vector<4x8x8xf32> -> vector<4x8x8xf32>
    %c0_37 = arith.constant 0 : index
    %c0_38 = arith.constant 0 : index
    %c0_39 = arith.constant 0 : index
    %85 = vector.load %arg25[%c0_37, %c0_38, %c0_39] : memref<4x8x8xf32, #tpu.memory_space<vmem>>, vector<4x8x8xf32>
    %86 = vector.broadcast %73 : vector<4x8x1xf32> to vector<4x8x8xf32>
    %87 = arith.mulf %86, %85 : vector<4x8x8xf32>
    %88 = arith.addf %87, %84 : vector<4x8x8xf32>
    %c0_40 = arith.constant 0 : index
    %c0_41 = arith.constant 0 : index
    %c0_42 = arith.constant 0 : index
    %89 = vector.load %arg25[%c0_40, %c0_41, %c0_42] : memref<4x8x8xf32, #tpu.memory_space<vmem>>, vector<4x8x8xf32>
    tpu.vector_store %arg25[%c0_40, %c0_41, %c0_42], %88 {strides = array<i32>} : memref<4x8x8xf32, #tpu.memory_space<vmem>>, vector<4x8x8xf32>,
    %c0_43 = arith.constant 0 : index
    %c0_44 = arith.constant 0 : index
    %c0_45 = arith.constant 0 : index
    %90 = vector.load %arg23[%c0_43, %c0_44, %c0_45] : memref<4x8x1xf32, #tpu.memory_space<vmem>>, vector<4x8x1xf32>
    tpu.vector_store %arg23[%c0_43, %c0_44, %c0_45], %71 {strides = array<i32>} : memref<4x8x1xf32, #tpu.memory_space<vmem>>, vector<4x8x1xf32>,
    %c0_i32_46 = arith.constant 0 : i32
    %91 = arith.cmpi eq, %arg2, %c0_i32_46 : i32
    %92 = arith.extui %91 : i1 to i32
    %c0_i32_47 = arith.constant 0 : i32
    %93 = arith.cmpi ne, %92, %c0_i32_47 : i32
    scf.if %93 {
      %c0_48 = arith.constant 0 : index
      %c0_49 = arith.constant 0 : index
      %c0_50 = arith.constant 0 : index
      %94 = vector.load %arg3[%c0_48, %c0_49, %c0_50] : memref<1x8x32xf32, #tpu.memory_space<vmem>>, vector<1x8x32xf32>
      %95 = vector.shape_cast %94 : vector<1x8x32xf32> to vector<8x32xf32>
      %c0_51 = arith.constant 0 : index
      %c0_52 = arith.constant 0 : index
      %c0_53 = arith.constant 0 : index
      %96 = vector.load %arg25[%c0_51, %c0_52, %c0_53] : memref<4x8x8xf32, #tpu.memory_space<vmem>>, vector<4x8x8xf32>
      %c0_54 = arith.constant 0 : index
      %c0_55 = arith.constant 0 : index
      %c0_56 = arith.constant 0 : index
      %97 = vector.load %arg24[%c0_54, %c0_55, %c0_56] : memref<4x8x1xf32, #tpu.memory_space<vmem>>, vector<4x8x1xf32>
      %98 = tpu.reciprocal %97 {approx = true} : vector<4x8x1xf32> -> vector<4x8x1xf32>
      %99 = vector.broadcast %98 : vector<4x8x1xf32> to vector<4x8x8xf32>
      %100 = arith.mulf %96, %99 : vector<4x8x8xf32>
      %101 = arith.truncf %100 : vector<4x8x8xf32> to vector<4x8x8xbf16>
      %c0_57 = arith.constant 0 : index
      %c0_58 = arith.constant 0 : index
      %c0_59 = arith.constant 0 : index
      %102 = vector.load %arg13[%c0_57, %c0_58, %c0_59] : memref<4x8x32xbf16, #tpu.memory_space<vmem>>, vector<4x8x32xbf16>
      %cst_60 = arith.constant dense<0.000000e+00> : vector<4x8x32xf32>
      %103 = tpu.matmul %101, %102, %cst_60 {dimension_numbers = #tpu.dot_dimension_numbers<[2], [1], [1], [2], [0, 0, 0, 1, 1, 2], [0], [0]>} : vector<4x8x8xbf16>, vector<4x8x32xbf16>, vector<4x8x32xf32> -> vector<4x8x32xf32>
      %cst_61 = arith.constant dense<0.000000e+00> : vector<8x32xf32>
      %104 = vector.multi_reduction <add>, %103, %cst_61 [0] : vector<4x8x32xf32> to vector<8x32xf32>
      %c0_62 = arith.constant 0 : index
      %c0_63 = arith.constant 0 : index
      %105 = vector.load %arg14[%c0_62, %c0_63] : memref<1x32xf32, #tpu.memory_space<vmem>>, vector<1x32xf32>
      %106 = vector.shape_cast %105 : vector<1x32xf32> to vector<32xf32>
      %107 = vector.shape_cast %106 : vector<32xf32> to vector<1x32xf32>
      %108 = vector.broadcast %107 : vector<1x32xf32> to vector<8x32xf32>
      %109 = arith.addf %104, %108 : vector<8x32xf32>
      %110 = arith.addf %95, %109 : vector<8x32xf32>
      %c0_64 = arith.constant 0 : index
      %c0_65 = arith.constant 0 : index
      %111 = vector.load %arg15[%c0_64, %c0_65] : memref<1x32xf32, #tpu.memory_space<vmem>>, vector<1x32xf32>
      %112 = vector.shape_cast %111 : vector<1x32xf32> to vector<32xf32>
      %c0_66 = arith.constant 0 : index
      %c0_67 = arith.constant 0 : index
      %113 = vector.load %arg16[%c0_66, %c0_67] : memref<1x32xf32, #tpu.memory_space<vmem>>, vector<1x32xf32>
      %114 = vector.shape_cast %113 : vector<1x32xf32> to vector<32xf32>
      %cst_68 = arith.constant dense<0.000000e+00> : vector<8xf32>
      %115 = vector.multi_reduction <add>, %110, %cst_68 [1] : vector<8x32xf32> to vector<8xf32>
      %116 = vector.shape_cast %115 : vector<8xf32> to vector<8x1xf32>
      %cst_69 = arith.constant 3.200000e+01 : f32
      %117 = vector.broadcast %cst_69 : f32 to vector<8x1xf32>
      %118 = arith.divf %116, %117 : vector<8x1xf32>
      %119 = vector.broadcast %118 : vector<8x1xf32> to vector<8x32xf32>
      %120 = arith.subf %110, %119 : vector<8x32xf32>
      %121 = arith.mulf %120, %120 : vector<8x32xf32>
      %cst_70 = arith.constant dense<0.000000e+00> : vector<8xf32>
      %122 = vector.multi_reduction <add>, %121, %cst_70 [1] : vector<8x32xf32> to vector<8xf32>
      %123 = vector.shape_cast %122 : vector<8xf32> to vector<8x1xf32>
      %cst_71 = arith.constant 3.200000e+01 : f32
      %124 = vector.broadcast %cst_71 : f32 to vector<8x1xf32>
      %125 = arith.divf %123, %124 : vector<8x1xf32>
      %cst_72 = arith.constant 9.99999974E-6 : f32
      %126 = vector.broadcast %cst_72 : f32 to vector<8x1xf32>
      %127 = arith.addf %125, %126 : vector<8x1xf32>
      %128 = math.rsqrt %127 : vector<8x1xf32>
      %129 = vector.broadcast %128 : vector<8x1xf32> to vector<8x32xf32>
      %130 = arith.mulf %120, %129 : vector<8x32xf32>
      %131 = vector.shape_cast %112 : vector<32xf32> to vector<1x32xf32>
      %132 = vector.broadcast %131 : vector<1x32xf32> to vector<8x32xf32>
      %133 = arith.mulf %130, %132 : vector<8x32xf32>
      %134 = vector.shape_cast %114 : vector<32xf32> to vector<1x32xf32>
      %135 = vector.broadcast %134 : vector<1x32xf32> to vector<8x32xf32>
      %136 = arith.addf %133, %135 : vector<8x32xf32>
      %137 = arith.truncf %136 : vector<8x32xf32> to vector<8x32xbf16>
      %c0_73 = arith.constant 0 : index
      %c0_74 = arith.constant 0 : index
      %138 = vector.load %arg17[%c0_73, %c0_74] : memref<32x64xbf16, #tpu.memory_space<vmem>>, vector<32x64xbf16>
      %cst_75 = arith.constant dense<0.000000e+00> : vector<8x64xf32>
      %139 = tpu.matmul %137, %138, %cst_75 {dimension_numbers = #tpu.dot_dimension_numbers<[1], [0], [0], [1], [0, 0, 1, 1], [], []>} : vector<8x32xbf16>, vector<32x64xbf16>, vector<8x64xf32> -> vector<8x64xf32>
      %c0_76 = arith.constant 0 : index
      %c0_77 = arith.constant 0 : index
      %140 = vector.load %arg18[%c0_76, %c0_77] : memref<1x64xf32, #tpu.memory_space<vmem>>, vector<1x64xf32>
      %141 = vector.shape_cast %140 : vector<1x64xf32> to vector<64xf32>
      %142 = vector.shape_cast %141 : vector<64xf32> to vector<1x64xf32>
      %143 = vector.broadcast %142 : vector<1x64xf32> to vector<8x64xf32>
      %144 = arith.addf %139, %143 : vector<8x64xf32>
      %cst_78 = arith.constant 0.000000e+00 : f32
      %145 = vector.broadcast %cst_78 : f32 to vector<8x64xf32>
      %146 = arith.maximumf %144, %145 : vector<8x64xf32>
      %147 = arith.truncf %146 : vector<8x64xf32> to vector<8x64xbf16>
      %c0_79 = arith.constant 0 : index
      %c0_80 = arith.constant 0 : index
      %148 = vector.load %arg19[%c0_79, %c0_80] : memref<64x32xbf16, #tpu.memory_space<vmem>>, vector<64x32xbf16>
      %cst_81 = arith.constant dense<0.000000e+00> : vector<8x32xf32>
      %149 = tpu.matmul %147, %148, %cst_81 {dimension_numbers = #tpu.dot_dimension_numbers<[1], [0], [0], [1], [0, 0, 1, 1], [], []>} : vector<8x64xbf16>, vector<64x32xbf16>, vector<8x32xf32> -> vector<8x32xf32>
      %c0_82 = arith.constant 0 : index
      %c0_83 = arith.constant 0 : index
      %150 = vector.load %arg20[%c0_82, %c0_83] : memref<1x32xf32, #tpu.memory_space<vmem>>, vector<1x32xf32>
      %151 = vector.shape_cast %150 : vector<1x32xf32> to vector<32xf32>
      %152 = vector.shape_cast %151 : vector<32xf32> to vector<1x32xf32>
      %153 = vector.broadcast %152 : vector<1x32xf32> to vector<8x32xf32>
      %154 = arith.addf %149, %153 : vector<8x32xf32>
      %155 = arith.addf %110, %154 : vector<8x32xf32>
      %c0_84 = arith.constant 0 : index
      %c0_85 = arith.constant 0 : index
      %c0_86 = arith.constant 0 : index
      %156 = vector.load %arg21[%c0_84, %c0_85, %c0_86] : memref<1x8x32xf32, #tpu.memory_space<vmem>>, vector<1x8x32xf32>
      %157 = vector.shape_cast %156 : vector<1x8x32xf32> to vector<8x32xf32>
      %158 = vector.shape_cast %155 : vector<8x32xf32> to vector<1x8x32xf32>
      tpu.vector_store %arg21[%c0_84, %c0_85, %c0_86], %158 {strides = array<i32>} : memref<1x8x32xf32, #tpu.memory_space<vmem>>, vector<1x8x32xf32>,
    } else {
    }
    return
  }
  func.func @transform_0(%arg0: i32, %arg1: i32, %arg2: i32) -> (i32, i32, i32) {
    %c0_i32 = arith.constant 0 : i32
    %c0_i32_0 = arith.constant 0 : i32
    return %arg0, %arg1, %c0_i32 : i32, i32, i32
  }
  func.func @transform_1(%arg0: i32, %arg1: i32, %arg2: i32) -> (i32, i32, i32) {
    %c0_i32 = arith.constant 0 : i32
    %c0_i32_0 = arith.constant 0 : i32
    return %arg0, %arg2, %c0_i32 : i32, i32, i32
  }
  func.func @transform_2(%arg0: i32, %arg1: i32, %arg2: i32) -> (i32, i32) {
    %c0_i32 = arith.constant 0 : i32
    %c0_i32_0 = arith.constant 0 : i32
    %c0_i32_1 = arith.constant 0 : i32
    return %c0_i32, %c0_i32_0 : i32, i32
  }
  func.func @transform_3(%arg0: i32, %arg1: i32, %arg2: i32) -> (i32, i32) {
    %c0_i32 = arith.constant 0 : i32
    %c0_i32_0 = arith.constant 0 : i32
    %c0_i32_1 = arith.constant 0 : i32
    return %c0_i32, %c0_i32_0 : i32, i32
  }
  func.func @transform_4(%arg0: i32, %arg1: i32, %arg2: i32) -> (i32, i32) {
    %c0_i32 = arith.constant 0 : i32
    %c0_i32_0 = arith.constant 0 : i32
    %c0_i32_1 = arith.constant 0 : i32
    return %c0_i32, %c0_i32_0 : i32, i32
  }
  func.func @transform_5(%arg0: i32, %arg1: i32, %arg2: i32) -> (i32, i32) {
    %c0_i32 = arith.constant 0 : i32
    %c0_i32_0 = arith.constant 0 : i32
    %c0_i32_1 = arith.constant 0 : i32
    return %c0_i32, %c0_i32_0 : i32, i32
  }
  func.func @transform_6(%arg0: i32, %arg1: i32, %arg2: i32) -> (i32, i32) {
    %c0_i32 = arith.constant 0 : i32
    %c0_i32_0 = arith.constant 0 : i32
    %c0_i32_1 = arith.constant 0 : i32
    return %c0_i32, %c0_i32_0 : i32, i32
  }
  func.func @transform_7(%arg0: i32, %arg1: i32, %arg2: i32) -> (i32, i32) {
    %c0_i32 = arith.constant 0 : i32
    %c0_i32_0 = arith.constant 0 : i32
    %c0_i32_1 = arith.constant 0 : i32
    return %c0_i32, %c0_i32_0 : i32, i32
  }
  func.func @transform_8(%arg0: i32, %arg1: i32, %arg2: i32) -> (i32, i32) {
    %c0_i32 = arith.constant 0 : i32
    %c0_i32_0 = arith.constant 0 : i32
    %c0_i32_1 = arith.constant 0 : i32
    return %c0_i32, %c0_i32_0 : i32, i32
  }
  func.func @transform_9(%arg0: i32, %arg1: i32, %arg2: i32) -> (i32, i32) {
    %c0_i32 = arith.constant 0 : i32
    %c0_i32_0 = arith.constant 0 : i32
    %c0_i32_1 = arith.constant 0 : i32
    return %c0_i32, %c0_i32_0 : i32, i32
  }
  func.func @transform_10(%arg0: i32, %arg1: i32, %arg2: i32) -> (i32, i32, i32) {
    %c0_i32 = arith.constant 0 : i32
    %c0_i32_0 = arith.constant 0 : i32
    %c0_i32_1 = arith.constant 0 : i32
    %c0_i32_2 = arith.constant 0 : i32
    return %c0_i32, %c0_i32_0, %c0_i32_1 : i32, i32, i32
  }
  func.func @transform_11(%arg0: i32, %arg1: i32, %arg2: i32) -> (i32, i32) {
    %c0_i32 = arith.constant 0 : i32
    %c0_i32_0 = arith.constant 0 : i32
    %c0_i32_1 = arith.constant 0 : i32
    return %c0_i32, %c0_i32_0 : i32, i32
  }
  func.func @transform_12(%arg0: i32, %arg1: i32, %arg2: i32) -> (i32, i32) {
    %c0_i32 = arith.constant 0 : i32
    %c0_i32_0 = arith.constant 0 : i32
    %c0_i32_1 = arith.constant 0 : i32
    return %c0_i32, %c0_i32_0 : i32, i32
  }
  func.func @transform_13(%arg0: i32, %arg1: i32, %arg2: i32) -> (i32, i32) {
    %c0_i32 = arith.constant 0 : i32
    %c0_i32_0 = arith.constant 0 : i32
    %c0_i32_1 = arith.constant 0 : i32
    return %c0_i32, %c0_i32_0 : i32, i32
  }
  func.func @transform_14(%arg0: i32, %arg1: i32, %arg2: i32) -> (i32, i32) {
    %c0_i32 = arith.constant 0 : i32
    %c0_i32_0 = arith.constant 0 : i32
    %c0_i32_1 = arith.constant 0 : i32
    return %c0_i32, %c0_i32_0 : i32, i32
  }
  func.func @transform_15(%arg0: i32, %arg1: i32, %arg2: i32) -> (i32, i32) {
    %c0_i32 = arith.constant 0 : i32
    %c0_i32_0 = arith.constant 0 : i32
    %c0_i32_1 = arith.constant 0 : i32
    return %c0_i32, %c0_i32_0 : i32, i32
  }
  func.func @transform_16(%arg0: i32, %arg1: i32, %arg2: i32) -> (i32, i32) {
    %c0_i32 = arith.constant 0 : i32
    %c0_i32_0 = arith.constant 0 : i32
    %c0_i32_1 = arith.constant 0 : i32
    return %c0_i32, %c0_i32_0 : i32, i32
  }
  func.func @transform_17(%arg0: i32, %arg1: i32, %arg2: i32) -> (i32, i32) {
    %c0_i32 = arith.constant 0 : i32
    %c0_i32_0 = arith.constant 0 : i32
    %c0_i32_1 = arith.constant 0 : i32
    return %c0_i32, %c0_i32_0 : i32, i32
  }
  func.func @transform_18(%arg0: i32, %arg1: i32, %arg2: i32) -> (i32, i32, i32) {
    %c0_i32 = arith.constant 0 : i32
    %c0_i32_0 = arith.constant 0 : i32
    return %arg0, %arg1, %c0_i32 : i32, i32, i32
  }
}

</mosaic_0001>

<llo_original>
// kernel: tpu_custom_call.1
$region0: #{tpu_custom_call.1}
  #allocation0 [shape = 'u32[]', space=smem, size = 0x4, offset = 0x4, fixed_abs, tag = 'smem constant byte address 0x4 - core index']
  #allocation1 [shape = 'u32[144,128]{1,0:T(1,128)}', space=vmem, size = 0x12000, scoped, tag = 'internal scratch']
  #allocation2 [shape = 'bf16[4,8,8]{2,1,0:T(8,128)(2,1)}', space=vmem, size = 0x2000, scoped, tag = 'scratch operand']
  #allocation3 [shape = 'f32[4,8,1]{2,1,0:T(8,128)}', space=vmem, size = 0x4000, scoped, tag = 'scratch operand']
  #allocation4 [shape = 'f32[4,8,1]{2,1,0:T(8,128)}', space=vmem, size = 0x4000, scoped, tag = 'scratch operand']
  #allocation5 [shape = 'f32[4,8,8]{2,1,0:T(8,128)}', space=vmem, size = 0x4000, scoped, tag = 'scratch operand']
  %s0 = inlined_call_operand.hbm [shape: f32[2,8,32], index: 0, kind: input, shape index: {}]
  %s1 = inlined_call_operand.hbm [shape: f32[2,8,32], index: 1, kind: input, shape index: {}]
  %s2 = inlined_call_operand.hbm [shape: f32[1,32], index: 2, kind: input, shape index: {}]
  %s3 = inlined_call_operand.hbm [shape: f32[1,32], index: 3, kind: input, shape index: {}]
  %s4 = inlined_call_operand.hbm [shape: bf16[32,32], index: 4, kind: input, shape index: {}]
  %s5 = inlined_call_operand.hbm [shape: f32[1,32], index: 5, kind: input, shape index: {}]
  %s6 = inlined_call_operand.hbm [shape: bf16[32,32], index: 6, kind: input, shape index: {}]
  %s7 = inlined_call_operand.hbm [shape: f32[1,32], index: 7, kind: input, shape index: {}]
  %s8 = inlined_call_operand.hbm [shape: bf16[32,32], index: 8, kind: input, shape index: {}]
  %s9 = inlined_call_operand.hbm [shape: f32[1,32], index: 9, kind: input, shape index: {}]
  %s10 = inlined_call_operand.hbm [shape: bf16[4,8,32], index: 10, kind: input, shape index: {}]
  %s11 = inlined_call_operand.hbm [shape: f32[1,32], index: 11, kind: input, shape index: {}]
  %s12 = inlined_call_operand.hbm [shape: f32[1,32], index: 12, kind: input, shape index: {}]
  %s13 = inlined_call_operand.hbm [shape: f32[1,32], index: 13, kind: input, shape index: {}]
  %s14 = inlined_call_operand.hbm [shape: bf16[32,64], index: 14, kind: input, shape index: {}]
  %s15 = inlined_call_operand.hbm [shape: f32[1,64], index: 15, kind: input, shape index: {}]
  %s16 = inlined_call_operand.hbm [shape: bf16[64,32], index: 16, kind: input, shape index: {}]
  %s17 = inlined_call_operand.hbm [shape: f32[1,32], index: 17, kind: input, shape index: {}]
  %s18 = inlined_call_operand.hbm [shape: f32[2,8,32], index: 18, kind: output, shape index: {}]
  %s19 = sld [smem:[#allocation0]]
  $region185: #{tpu_custom_call.1} parent=0
    _
  %s21 = ssub.s32 1, %s19
  %s22 = scalar_select 0, %s21, %s19
  $region1: #{tpu_custom_call.1} parent=0
    #allocation6 [shape = 'u8[8192]{0}', space=vmem, size = 0x2000, scoped, tag = 'input window, operand 0']
    #allocation7 [shape = 's32[2]{0}', space=sflag, size = 0x8, scoped, tag = 'scoped memory for tpu_custom_call.1']
    #allocation8 [shape = 's32[2]{0}', space=sflag, size = 0x8, scoped, tag = 'scoped memory for tpu_custom_call.1']
    #allocation9 [shape = 'u8[8192]{0}', space=vmem, size = 0x2000, scoped, tag = 'input window, operand 1']
    #allocation10 [shape = 's32[2]{0}', space=sflag, size = 0x8, scoped, tag = 'scoped memory for tpu_custom_call.1']
    #allocation11 [shape = 'u8[512]{0}', space=vmem, size = 0x400, scoped, tag = 'input window, operand 2, single buffered']
    #allocation12 [shape = 'u8[512]{0}', space=vmem, size = 0x400, scoped, tag = 'input window, operand 3, single buffered']
    #allocation13 [shape = 's32[1]{0}', space=sflag, size = 0x4, scoped, tag = 'scoped memory for tpu_custom_call.1']
    #allocation14 [shape = 'u8[8192]{0}', space=vmem, size = 0x2000, scoped, tag = 'input window, operand 4, single buffered']
    #allocation15 [shape = 'u8[512]{0}', space=vmem, size = 0x400, scoped, tag = 'input window, operand 5, single buffered']
    #allocation16 [shape = 's32[1]{0}', space=sflag, size = 0x4, scoped, tag = 'scoped memory for tpu_custom_call.1']
    #allocation17 [shape = 'u8[8192]{0}', space=vmem, size = 0x2000, scoped, tag = 'input window, operand 6, single buffered']
    #allocation18 [shape = 'u8[512]{0}', space=vmem, size = 0x400, scoped, tag = 'input window, operand 7, single buffered']
    #allocation19 [shape = 's32[1]{0}', space=sflag, size = 0x4, scoped, tag = 'scoped memory for tpu_custom_call.1']
    #allocation20 [shape = 'u8[8192]{0}', space=vmem, size = 0x2000, scoped, tag = 'input window, operand 8, single buffered']
    #allocation21 [shape = 'u8[512]{0}', space=vmem, size = 0x400, scoped, tag = 'input window, operand 9, single buffered']
    #allocation22 [shape = 's32[1]{0}', space=sflag, size = 0x4, scoped, tag = 'scoped memory for tpu_custom_call.1']
    #allocation23 [shape = 'u8[8192]{0}', space=vmem, size = 0x2000, scoped, tag = 'input window, operand 10, single buffered']
    #allocation24 [shape = 'u8[512]{0}', space=vmem, size = 0x400, scoped, tag = 'input window, operand 11, single buffered']
    #allocation25 [shape = 's32[1]{0}', space=sflag, size = 0x4, scoped, tag = 'scoped memory for tpu_custom_call.1']
    #allocation26 [shape = 'u8[512]{0}', space=vmem, size = 0x400, scoped, tag = 'input window, operand 12, single buffered']
    #allocation27 [shape = 'u8[512]{0}', space=vmem, size = 0x400, scoped, tag = 'input window, operand 13, single buffered']
    #allocation28 [shape = 's32[1]{0}', space=sflag, size = 0x4, scoped, tag = 'scoped memory for tpu_custom_call.1']
    #allocation29 [shape = 'u8[8192]{0}', space=vmem, size = 0x2000, scoped, tag = 'input window, operand 14, single buffered']
    #allocation30 [shape = 'u8[512]{0}', space=vmem, size = 0x400, scoped, tag = 'input window, operand 15, single buffered']
    #allocation31 [shape = 's32[1]{0}', space=sflag, size = 0x4, scoped, tag = 'scoped memory for tpu_custom_call.1']
    #allocation32 [shape = 'u8[16384]{0}', space=vmem, size = 0x4000, scoped, tag = 'input window, operand 16, single buffered']
    #allocation33 [shape = 'u8[512]{0}', space=vmem, size = 0x400, scoped, tag = 'input window, operand 17, single buffered']
    #allocation34 [shape = 's32[1]{0}', space=sflag, size = 0x4, scoped, tag = 'scoped memory for tpu_custom_call.1']
    #allocation35 [shape = 'u8[8192]{0}', space=vmem, size = 0x2000, scoped, tag = 'output window, operand 0']
    %23 = vsyncpa [#allocation7], 0
    %s24 = scalar_lea.sflag [#allocation7], 1
    %25 = vsyncpa %s24, 0
    %26 = vsyncpa [#allocation10], 0
    %s27 = scalar_lea.sflag [#allocation10], 1
    %28 = vsyncpa %s27, 0
    %29 = vsyncpa [#allocation13], 0
    %30 = vsyncpa [#allocation16], 0
    %31 = vsyncpa [#allocation19], 0
    %32 = vsyncpa [#allocation22], 0
    %33 = vsyncpa [#allocation25], 0
    %34 = vsyncpa [#allocation28], 0
    %35 = vsyncpa [#allocation31], 0
    %36 = vsyncpa [#allocation34], 0
    %37 = vsyncpa [#allocation8], 0
    %s38 = scalar_lea.sflag [#allocation8], 1
    %39 = vsyncpa %s38, 0
    loop: start=0, step=1, limit=4
    $region2: #{tpu_custom_call.1} parent=1 // loop_pre_header
      _
    $region3: #{tpu_custom_call.1} parent=1 // loop_header
      %s41 = sphi 0, %s45
      %p42 = scmp.ge.s32.totalorder %s41, 4
      %s48 = sphi 0, %s67
      %s49 = sphi 0, %s63
      %s50 = sphi 0, %s59
      %s51 = sphi 0, %s48
      %s52 = sphi 0, %s49
      %s53 = sphi 0, %s50
      %s54 = sphi 0, %s51
      %s55 = sphi 0, %s52
      %s56 = sphi 0, %s53
      %s72 = sphi 0, %s74
      %s75 = sphi 0, %s72
      %s76 = sphi 0, %s75
      %s92 = sphi 0, %s76
      %s100 = sphi 0, %s102
      %s103 = sphi 0, %s100
      %s104 = sphi 0, %s103
      %s120 = sphi 0, %s104
      %s124 = sphi 0, %s124
      %s126 = sphi 0, %s124
      %s127 = sphi 0, %s126
      %s141 = sphi 0, %s127
      %s145 = sphi 0, %s145
      %s147 = sphi 0, %s145
      %s148 = sphi 0, %s147
      %s162 = sphi 0, %s148
      %s166 = sphi 0, %s166
      %s168 = sphi 0, %s166
      %s169 = sphi 0, %s168
      %s183 = sphi 0, %s169
      %s187 = sphi 0, %s187
      %s189 = sphi 0, %s187
      %s190 = sphi 0, %s189
      %s204 = sphi 0, %s190
      %s208 = sphi 0, %s208
      %s210 = sphi 0, %s208
      %s211 = sphi 0, %s210
      %s225 = sphi 0, %s211
      %s229 = sphi 0, %s229
      %s231 = sphi 0, %s229
      %s232 = sphi 0, %s231
      %s246 = sphi 0, %s232
      %s250 = sphi 0, %s250
      %s252 = sphi 0, %s250
      %s253 = sphi 0, %s252
      %s267 = sphi 0, %s253
      %s271 = sphi 0, %s271
      %s273 = sphi 0, %s271
      %s274 = sphi 0, %s273
      %s288 = sphi 0, %s274
      %s292 = sphi 0, %s292
      %s294 = sphi 0, %s292
      %s295 = sphi 0, %s294
      %s309 = sphi 0, %s295
      %s313 = sphi 0, %s313
      %s315 = sphi 0, %s313
      %s316 = sphi 0, %s315
      %s330 = sphi 0, %s316
      %s334 = sphi 0, %s334
      %s336 = sphi 0, %s334
      %s337 = sphi 0, %s336
      %s351 = sphi 0, %s337
      %s355 = sphi 0, %s355
      %s357 = sphi 0, %s355
      %s358 = sphi 0, %s357
      %s372 = sphi 0, %s358
      %s376 = sphi 0, %s376
      %s378 = sphi 0, %s376
      %s379 = sphi 0, %s378
      %s393 = sphi 0, %s379
      %s397 = sphi 0, %s397
      %s399 = sphi 0, %s397
      %s400 = sphi 0, %s399
      %s414 = sphi 0, %s400
      %s418 = sphi 0, %s418
      %s420 = sphi 0, %s418
      %s421 = sphi 0, %s420
      %s435 = sphi 0, %s421
      %s439 = sphi 0, %s439
      %s441 = sphi 0, %s439
      %s442 = sphi 0, %s441
      %s456 = sphi 0, %s442
      %s464 = sphi 0, %s466
      %s467 = sphi 0, %s464
      %s468 = sphi 0, %s467
      %s484 = sphi 0, %s468
    $region4: #{tpu_custom_call.1} parent=1 // loop_header_branch
      %44 = sbr.rel (%p42) target = $region8
    $region5: #{tpu_custom_call.1} parent=1 // loop_body
      %s46 = ssub.s32 %s41, 1
      %s47 = ssub.s32 %s41, 2
      %s57 = sadd.s32 1, %s50
      %p58 = scmp.ge.s32.totalorder %s57, 1
      %s59 = scalar_select %p58, 0, %s57
      %s60 = sadd.s32 1, %s49
      %s61 = scalar_select %p58, %s60, %s49
      %p62 = scmp.ge.s32.totalorder %s61, 1
      %s63 = scalar_select %p62, 0, %s61
      %s64 = sadd.s32 1, %s48
      %s65 = scalar_select %p62, %s64, %s48
      %p66 = scmp.ge.s32.totalorder %s65, 2
      %s67 = scalar_select %p66, 0, %s65
      %s68 = ssub.s32 %s48, %s67
      %s69 = ssub.s32 %s49, %s63
      %s70 = sor.u32 %s68, %s69
      %p71 = scmp.eq.s32.totalorder %s70, 0
      %s73 = sadd.s32 %s72, 1
      %s74 = scalar_select %p71, %s72, %s73
      %p77 = pneg %p71
      %p78 = scmp.eq.s32.totalorder %s41, 1
      %p79 = por %p77, %p78
      %p80 = scmp.ne.s32.totalorder %s72, %s75
      %p81 = scmp.eq.s32.totalorder %s41, 0
      %p82 = por %p80, %p81
      %p83 = scmp.ne.s32.totalorder %s72, %s75
      %p84 = scmp.eq.s32.totalorder %s46, 1
      %p85 = por %p83, %p84
      %p86 = scmp.ne.s32.totalorder %s75, %s76
      %p87 = scmp.eq.s32.totalorder %s46, 0
      %p88 = por %p86, %p87
      %p89 = scmp.ne.s32.totalorder %s75, %s76
      %p90 = scmp.eq.s32.totalorder %s47, 1
      %p91 = por %p89, %p90
      %p93 = scmp.ne.s32.totalorder %s76, %s92
      %p94 = scmp.eq.s32.totalorder %s47, 0
      %p95 = por %p93, %p94
      %s96 = ssub.s32 %s48, %s67
      %s97 = ssub.s32 %s50, %s59
      %s98 = sor.u32 %s96, %s97
      %p99 = scmp.eq.s32.totalorder %s98, 0
      %s101 = sadd.s32 %s100, 1
      %s102 = scalar_select %p99, %s100, %s101
      %p105 = pneg %p99
      %p106 = scmp.eq.s32.totalorder %s41, 1
      %p107 = por %p105, %p106
      %p108 = scmp.ne.s32.totalorder %s100, %s103
      %p109 = scmp.eq.s32.totalorder %s41, 0
      %p110 = por %p108, %p109
      %p111 = scmp.ne.s32.totalorder %s100, %s103
      %p112 = scmp.eq.s32.totalorder %s46, 1
      %p113 = por %p111, %p112
      %p114 = scmp.ne.s32.totalorder %s103, %s104
      %p115 = scmp.eq.s32.totalorder %s46, 0
      %p116 = por %p114, %p115
      %p117 = scmp.ne.s32.totalorder %s103, %s104
      %p118 = scmp.eq.s32.totalorder %s47, 1
      %p119 = por %p117, %p118
      %p121 = scmp.ne.s32.totalorder %s104, %s120
      %p122 = scmp.eq.s32.totalorder %s47, 0
      %p123 = por %p121, %p122
      %s125 = sadd.s32 %s124, 1
      %p128 = scmp.eq.s32.totalorder %s41, 1
      %p129 = scmp.ne.s32.totalorder %s124, %s126
      %p130 = scmp.eq.s32.totalorder %s41, 0
      %p131 = por %p129, %p130
      %p132 = scmp.ne.s32.totalorder %s124, %s126
      %p133 = scmp.eq.s32.totalorder %s46, 1
      %p134 = por %p132, %p133
      %p135 = scmp.ne.s32.totalorder %s126, %s127
      %p136 = scmp.eq.s32.totalorder %s46, 0
      %p137 = por %p135, %p136
      %p138 = scmp.ne.s32.totalorder %s126, %s127
      %p139 = scmp.eq.s32.totalorder %s47, 1
      %p140 = por %p138, %p139
      %p142 = scmp.ne.s32.totalorder %s127, %s141
      %p143 = scmp.eq.s32.totalorder %s47, 0
      %p144 = por %p142, %p143
      %s146 = sadd.s32 %s145, 1
      %p149 = scmp.eq.s32.totalorder %s41, 1
      %p150 = scmp.ne.s32.totalorder %s145, %s147
      %p151 = scmp.eq.s32.totalorder %s41, 0
      %p152 = por %p150, %p151
      %p153 = scmp.ne.s32.totalorder %s145, %s147
      %p154 = scmp.eq.s32.totalorder %s46, 1
      %p155 = por %p153, %p154
      %p156 = scmp.ne.s32.totalorder %s147, %s148
      %p157 = scmp.eq.s32.totalorder %s46, 0
      %p158 = por %p156, %p157
      %p159 = scmp.ne.s32.totalorder %s147, %s148
      %p160 = scmp.eq.s32.totalorder %s47, 1
      %p161 = por %p159, %p160
      %p163 = scmp.ne.s32.totalorder %s148, %s162
      %p164 = scmp.eq.s32.totalorder %s47, 0
      %p165 = por %p163, %p164
      %s167 = sadd.s32 %s166, 1
      %p170 = scmp.eq.s32.totalorder %s41, 1
      %p171 = scmp.ne.s32.totalorder %s166, %s168
      %p172 = scmp.eq.s32.totalorder %s41, 0
      %p173 = por %p171, %p172
      %p174 = scmp.ne.s32.totalorder %s166, %s168
      %p175 = scmp.eq.s32.totalorder %s46, 1
      %p176 = por %p174, %p175
      %p177 = scmp.ne.s32.totalorder %s168, %s169
      %p178 = scmp.eq.s32.totalorder %s46, 0
      %p179 = por %p177, %p178
      %p180 = scmp.ne.s32.totalorder %s168, %s169
      %p181 = scmp.eq.s32.totalorder %s47, 1
      %p182 = por %p180, %p181
      %p184 = scmp.ne.s32.totalorder %s169, %s183
      %p185 = scmp.eq.s32.totalorder %s47, 0
      %p186 = por %p184, %p185
      %s188 = sadd.s32 %s187, 1
      %p191 = scmp.eq.s32.totalorder %s41, 1
      %p192 = scmp.ne.s32.totalorder %s187, %s189
      %p193 = scmp.eq.s32.totalorder %s41, 0
      %p194 = por %p192, %p193
      %p195 = scmp.ne.s32.totalorder %s187, %s189
      %p196 = scmp.eq.s32.totalorder %s46, 1
      %p197 = por %p195, %p196
      %p198 = scmp.ne.s32.totalorder %s189, %s190
      %p199 = scmp.eq.s32.totalorder %s46, 0
      %p200 = por %p198, %p199
      %p201 = scmp.ne.s32.totalorder %s189, %s190
      %p202 = scmp.eq.s32.totalorder %s47, 1
      %p203 = por %p201, %p202
      %p205 = scmp.ne.s32.totalorder %s190, %s204
      %p206 = scmp.eq.s32.totalorder %s47, 0
      %p207 = por %p205, %p206
      %s209 = sadd.s32 %s208, 1
      %p212 = scmp.eq.s32.totalorder %s41, 1
      %p213 = scmp.ne.s32.totalorder %s208, %s210
      %p214 = scmp.eq.s32.totalorder %s41, 0
      %p215 = por %p213, %p214
      %p216 = scmp.ne.s32.totalorder %s208, %s210
      %p217 = scmp.eq.s32.totalorder %s46, 1
      %p218 = por %p216, %p217
      %p219 = scmp.ne.s32.totalorder %s210, %s211
      %p220 = scmp.eq.s32.totalorder %s46, 0
      %p221 = por %p219, %p220
      %p222 = scmp.ne.s32.totalorder %s210, %s211
      %p223 = scmp.eq.s32.totalorder %s47, 1
      %p224 = por %p222, %p223
      %p226 = scmp.ne.s32.totalorder %s211, %s225
      %p227 = scmp.eq.s32.totalorder %s47, 0
      %p228 = por %p226, %p227
      %s230 = sadd.s32 %s229, 1
      %p233 = scmp.eq.s32.totalorder %s41, 1
      %p234 = scmp.ne.s32.totalorder %s229, %s231
      %p235 = scmp.eq.s32.totalorder %s41, 0
      %p236 = por %p234, %p235
      %p237 = scmp.ne.s32.totalorder %s229, %s231
      %p238 = scmp.eq.s32.totalorder %s46, 1
      %p239 = por %p237, %p238
      %p240 = scmp.ne.s32.totalorder %s231, %s232
      %p241 = scmp.eq.s32.totalorder %s46, 0
      %p242 = por %p240, %p241
      %p243 = scmp.ne.s32.totalorder %s231, %s232
      %p244 = scmp.eq.s32.totalorder %s47, 1
      %p245 = por %p243, %p244
      %p247 = scmp.ne.s32.totalorder %s232, %s246
      %p248 = scmp.eq.s32.totalorder %s47, 0
      %p249 = por %p247, %p248
      %s251 = sadd.s32 %s250, 1
      %p254 = scmp.eq.s32.totalorder %s41, 1
      %p255 = scmp.ne.s32.totalorder %s250, %s252
      %p256 = scmp.eq.s32.totalorder %s41, 0
      %p257 = por %p255, %p256
      %p258 = scmp.ne.s32.totalorder %s250, %s252
      %p259 = scmp.eq.s32.totalorder %s46, 1
      %p260 = por %p258, %p259
      %p261 = scmp.ne.s32.totalorder %s252, %s253
      %p262 = scmp.eq.s32.totalorder %s46, 0
      %p263 = por %p261, %p262
      %p264 = scmp.ne.s32.totalorder %s252, %s253
      %p265 = scmp.eq.s32.totalorder %s47, 1
      %p266 = por %p264, %p265
      %p268 = scmp.ne.s32.totalorder %s253, %s267
      %p269 = scmp.eq.s32.totalorder %s47, 0
      %p270 = por %p268, %p269
      %s272 = sadd.s32 %s271, 1
      %p275 = scmp.eq.s32.totalorder %s41, 1
      %p276 = scmp.ne.s32.totalorder %s271, %s273
      %p277 = scmp.eq.s32.totalorder %s41, 0
      %p278 = por %p276, %p277
      %p279 = scmp.ne.s32.totalorder %s271, %s273
      %p280 = scmp.eq.s32.totalorder %s46, 1
      %p281 = por %p279, %p280
      %p282 = scmp.ne.s32.totalorder %s273, %s274
      %p283 = scmp.eq.s32.totalorder %s46, 0
      %p284 = por %p282, %p283
      %p285 = scmp.ne.s32.totalorder %s273, %s274
      %p286 = scmp.eq.s32.totalorder %s47, 1
      %p287 = por %p285, %p286
      %p289 = scmp.ne.s32.totalorder %s274, %s288
      %p290 = scmp.eq.s32.totalorder %s47, 0
      %p291 = por %p289, %p290
      %s293 = sadd.s32 %s292, 1
      %p296 = scmp.eq.s32.totalorder %s41, 1
      %p297 = scmp.ne.s32.totalorder %s292, %s294
      %p298 = scmp.eq.s32.totalorder %s41, 0
      %p299 = por %p297, %p298
      %p300 = scmp.ne.s32.totalorder %s292, %s294
      %p301 = scmp.eq.s32.totalorder %s46, 1
      %p302 = por %p300, %p301
      %p303 = scmp.ne.s32.totalorder %s294, %s295
      %p304 = scmp.eq.s32.totalorder %s46, 0
      %p305 = por %p303, %p304
      %p306 = scmp.ne.s32.totalorder %s294, %s295
      %p307 = scmp.eq.s32.totalorder %s47, 1
      %p308 = por %p306, %p307
      %p310 = scmp.ne.s32.totalorder %s295, %s309
      %p311 = scmp.eq.s32.totalorder %s47, 0
      %p312 = por %p310, %p311
      %s314 = sadd.s32 %s313, 1
      %p317 = scmp.eq.s32.totalorder %s41, 1
      %p318 = scmp.ne.s32.totalorder %s313, %s315
      %p319 = scmp.eq.s32.totalorder %s41, 0
      %p320 = por %p318, %p319
      %p321 = scmp.ne.s32.totalorder %s313, %s315
      %p322 = scmp.eq.s32.totalorder %s46, 1
      %p323 = por %p321, %p322
      %p324 = scmp.ne.s32.totalorder %s315, %s316
      %p325 = scmp.eq.s32.totalorder %s46, 0
      %p326 = por %p324, %p325
      %p327 = scmp.ne.s32.totalorder %s315, %s316
      %p328 = scmp.eq.s32.totalorder %s47, 1
      %p329 = por %p327, %p328
      %p331 = scmp.ne.s32.totalorder %s316, %s330
      %p332 = scmp.eq.s32.totalorder %s47, 0
      %p333 = por %p331, %p332
      %s335 = sadd.s32 %s334, 1
      %p338 = scmp.eq.s32.totalorder %s41, 1
      %p339 = scmp.ne.s32.totalorder %s334, %s336
      %p340 = scmp.eq.s32.totalorder %s41, 0
      %p341 = por %p339, %p340
      %p342 = scmp.ne.s32.totalorder %s334, %s336
      %p343 = scmp.eq.s32.totalorder %s46, 1
      %p344 = por %p342, %p343
      %p345 = scmp.ne.s32.totalorder %s336, %s337
      %p346 = scmp.eq.s32.totalorder %s46, 0
      %p347 = por %p345, %p346
      %p348 = scmp.ne.s32.totalorder %s336, %s337
      %p349 = scmp.eq.s32.totalorder %s47, 1
      %p350 = por %p348, %p349
      %p352 = scmp.ne.s32.totalorder %s337, %s351
      %p353 = scmp.eq.s32.totalorder %s47, 0
      %p354 = por %p352, %p353
      %s356 = sadd.s32 %s355, 1
      %p359 = scmp.eq.s32.totalorder %s41, 1
      %p360 = scmp.ne.s32.totalorder %s355, %s357
      %p361 = scmp.eq.s32.totalorder %s41, 0
      %p362 = por %p360, %p361
      %p363 = scmp.ne.s32.totalorder %s355, %s357
      %p364 = scmp.eq.s32.totalorder %s46, 1
      %p365 = por %p363, %p364
      %p366 = scmp.ne.s32.totalorder %s357, %s358
      %p367 = scmp.eq.s32.totalorder %s46, 0
      %p368 = por %p366, %p367
      %p369 = scmp.ne.s32.totalorder %s357, %s358
      %p370 = scmp.eq.s32.totalorder %s47, 1
      %p371 = por %p369, %p370
      %p373 = scmp.ne.s32.totalorder %s358, %s372
      %p374 = scmp.eq.s32.totalorder %s47, 0
      %p375 = por %p373, %p374
      %s377 = sadd.s32 %s376, 1
      %p380 = scmp.eq.s32.totalorder %s41, 1
      %p381 = scmp.ne.s32.totalorder %s376, %s378
      %p382 = scmp.eq.s32.totalorder %s41, 0
      %p383 = por %p381, %p382
      %p384 = scmp.ne.s32.totalorder %s376, %s378
      %p385 = scmp.eq.s32.totalorder %s46, 1
      %p386 = por %p384, %p385
      %p387 = scmp.ne.s32.totalorder %s378, %s379
      %p388 = scmp.eq.s32.totalorder %s46, 0
      %p389 = por %p387, %p388
      %p390 = scmp.ne.s32.totalorder %s378, %s379
      %p391 = scmp.eq.s32.totalorder %s47, 1
      %p392 = por %p390, %p391
      %p394 = scmp.ne.s32.totalorder %s379, %s393
      %p395 = scmp.eq.s32.totalorder %s47, 0
      %p396 = por %p394, %p395
      %s398 = sadd.s32 %s397, 1
      %p401 = scmp.eq.s32.totalorder %s41, 1
      %p402 = scmp.ne.s32.totalorder %s397, %s399
      %p403 = scmp.eq.s32.totalorder %s41, 0
      %p404 = por %p402, %p403
      %p405 = scmp.ne.s32.totalorder %s397, %s399
      %p406 = scmp.eq.s32.totalorder %s46, 1
      %p407 = por %p405, %p406
      %p408 = scmp.ne.s32.totalorder %s399, %s400
      %p409 = scmp.eq.s32.totalorder %s46, 0
      %p410 = por %p408, %p409
      %p411 = scmp.ne.s32.totalorder %s399, %s400
      %p412 = scmp.eq.s32.totalorder %s47, 1
      %p413 = por %p411, %p412
      %p415 = scmp.ne.s32.totalorder %s400, %s414
      %p416 = scmp.eq.s32.totalorder %s47, 0
      %p417 = por %p415, %p416
      %s419 = sadd.s32 %s418, 1
      %p422 = scmp.eq.s32.totalorder %s41, 1
      %p423 = scmp.ne.s32.totalorder %s418, %s420
      %p424 = scmp.eq.s32.totalorder %s41, 0
      %p425 = por %p423, %p424
      %p426 = scmp.ne.s32.totalorder %s418, %s420
      %p427 = scmp.eq.s32.totalorder %s46, 1
      %p428 = por %p426, %p427
      %p429 = scmp.ne.s32.totalorder %s420, %s421
      %p430 = scmp.eq.s32.totalorder %s46, 0
      %p431 = por %p429, %p430
      %p432 = scmp.ne.s32.totalorder %s420, %s421
      %p433 = scmp.eq.s32.totalorder %s47, 1
      %p434 = por %p432, %p433
      %p436 = scmp.ne.s32.totalorder %s421, %s435
      %p437 = scmp.eq.s32.totalorder %s47, 0
      %p438 = por %p436, %p437
      %s440 = sadd.s32 %s439, 1
      %p443 = scmp.eq.s32.totalorder %s41, 1
      %p444 = scmp.ne.s32.totalorder %s439, %s441
      %p445 = scmp.eq.s32.totalorder %s41, 0
      %p446 = por %p444, %p445
      %p447 = scmp.ne.s32.totalorder %s439, %s441
      %p448 = scmp.eq.s32.totalorder %s46, 1
      %p449 = por %p447, %p448
      %p450 = scmp.ne.s32.totalorder %s441, %s442
      %p451 = scmp.eq.s32.totalorder %s46, 0
      %p452 = por %p450, %p451
      %p453 = scmp.ne.s32.totalorder %s441, %s442
      %p454 = scmp.eq.s32.totalorder %s47, 1
      %p455 = por %p453, %p454
      %p457 = scmp.ne.s32.totalorder %s442, %s456
      %p458 = scmp.eq.s32.totalorder %s47, 0
      %p459 = por %p457, %p458
      %s460 = ssub.s32 %s48, %s67
      %s461 = ssub.s32 %s49, %s63
      %s462 = sor.u32 %s460, %s461
      %p463 = scmp.eq.s32.totalorder %s462, 0
      %s465 = sadd.s32 %s464, 1
      %s466 = scalar_select %p463, %s464, %s465
      %p469 = pneg %p463
      %p470 = scmp.eq.s32.totalorder %s41, 1
      %p471 = por %p469, %p470
      %p472 = scmp.ne.s32.totalorder %s464, %s467
      %p473 = scmp.eq.s32.totalorder %s41, 0
      %p474 = por %p472, %p473
      %p475 = scmp.ne.s32.totalorder %s464, %s467
      %p476 = scmp.eq.s32.totalorder %s46, 1
      %p477 = por %p475, %p476
      %p478 = scmp.ne.s32.totalorder %s467, %s468
      %p479 = scmp.eq.s32.totalorder %s46, 0
      %p480 = por %p478, %p479
      %p481 = scmp.ne.s32.totalorder %s467, %s468
      %p482 = scmp.eq.s32.totalorder %s47, 1
      %p483 = por %p481, %p482
      %p485 = scmp.ne.s32.totalorder %s468, %s484
      %p486 = scmp.eq.s32.totalorder %s47, 0
      %p487 = por %p485, %p486
      %p488 = scmp.le.s32.totalorder 1, %s41
      %p489 = scmp.lt.s32.totalorder %s41, 3
      %p490 = pnand %p488, %p489
      %p491 = pneg %p490
      // Predicated region
      $region9: #{tpu_custom_call.1} parent=5 // pred_check
        _
      $region10: #{tpu_custom_call.1} parent=5 // pred_check_branch
        %493 = sbr.rel (%p490) target = $region12
      $region11: #{tpu_custom_call.1} parent=5 // pred_region
        %s494 = ssub.s32 %s41, 1
        // Predicated region
        $region13: #{tpu_custom_call.1} parent=11 // pred_check
          %p495 = pneg %p137
        $region14: #{tpu_custom_call.1} parent=11 // pred_check_branch
          %497 = sbr.rel (%p495) target = $region16
        $region15: #{tpu_custom_call.1} parent=11 // pred_region
          %s499 = ssub.s32 16, 16
          %500 = vsyncadd [#allocation10], %s499
          %s502 = sshll.u32 [#allocation11], 4
          %s503 = int_to_ptr.vmem [resolvable:$true] %s502
          %505 = dma.hbm_to_vmem [thread:$0]  %s2, 16, %s503, [#allocation10]
        $region16: #{tpu_custom_call.1} parent=11 // pred_fallthru
          _
        // Predicated region
        $region17: #{tpu_custom_call.1} parent=11 // pred_check
          %p506 = pneg %p158
        $region18: #{tpu_custom_call.1} parent=11 // pred_check_branch
          %508 = sbr.rel (%p506) target = $region20
        $region19: #{tpu_custom_call.1} parent=11 // pred_region
          %s510 = ssub.s32 16, 16
          %511 = vsyncadd [#allocation13], %s510
          %s513 = sshll.u32 [#allocation12], 4
          %s514 = int_to_ptr.vmem [resolvable:$true] %s513
          %516 = dma.hbm_to_vmem [thread:$0]  %s3, 16, %s514, [#allocation13]
        $region20: #{tpu_custom_call.1} parent=11 // pred_fallthru
          _
        // Predicated region
        $region21: #{tpu_custom_call.1} parent=11 // pred_check
          %p517 = pneg %p179
        $region22: #{tpu_custom_call.1} parent=11 // pred_check_branch
          %519 = sbr.rel (%p517) target = $region24
        $region23: #{tpu_custom_call.1} parent=11 // pred_region
          %s521 = ssub.s32 256, 256
          %522 = vsyncadd [#allocation13], %s521
          %s523 = sshll.u32 [#allocation14], 4
          %s524 = int_to_ptr.vmem [resolvable:$true] %s523
          %529 = dma.hbm_to_vmem [thread:$0]  %s4, 256, %s524, [#allocation13], 64, 64, 4
        $region24: #{tpu_custom_call.1} parent=11 // pred_fallthru
          _
        // Predicated region
        $region25: #{tpu_custom_call.1} parent=11 // pred_check
          %p530 = pneg %p200
        $region26: #{tpu_custom_call.1} parent=11 // pred_check_branch
          %532 = sbr.rel (%p530) target = $region28
        $region27: #{tpu_custom_call.1} parent=11 // pred_region
          %s534 = ssub.s32 16, 16
          %535 = vsyncadd [#allocation16], %s534
          %s537 = sshll.u32 [#allocation15], 4
          %s538 = int_to_ptr.vmem [resolvable:$true] %s537
          %540 = dma.hbm_to_vmem [thread:$0]  %s5, 16, %s538, [#allocation16]
        $region28: #{tpu_custom_call.1} parent=11 // pred_fallthru
          _
        // Predicated region
        $region29: #{tpu_custom_call.1} parent=11 // pred_check
          %p541 = pneg %p221
        $region30: #{tpu_custom_call.1} parent=11 // pred_check_branch
          %543 = sbr.rel (%p541) target = $region32
        $region31: #{tpu_custom_call.1} parent=11 // pred_region
          %s545 = ssub.s32 256, 256
          %546 = vsyncadd [#allocation16], %s545
          %s547 = sshll.u32 [#allocation17], 4
          %s548 = int_to_ptr.vmem [resolvable:$true] %s547
          %553 = dma.hbm_to_vmem [thread:$0]  %s6, 256, %s548, [#allocation16], 64, 64, 4
        $region32: #{tpu_custom_call.1} parent=11 // pred_fallthru
          _
        // Predicated region
        $region33: #{tpu_custom_call.1} parent=11 // pred_check
          %p554 = pneg %p242
        $region34: #{tpu_custom_call.1} parent=11 // pred_check_branch
          %556 = sbr.rel (%p554) target = $region36
        $region35: #{tpu_custom_call.1} parent=11 // pred_region
          %s558 = ssub.s32 16, 16
          %559 = vsyncadd [#allocation19], %s558
          %s561 = sshll.u32 [#allocation18], 4
          %s562 = int_to_ptr.vmem [resolvable:$true] %s561
          %564 = dma.hbm_to_vmem [thread:$0]  %s7, 16, %s562, [#allocation19]
        $region36: #{tpu_custom_call.1} parent=11 // pred_fallthru
          _
        // Predicated region
        $region37: #{tpu_custom_call.1} parent=11 // pred_check
          %p565 = pneg %p263
        $region38: #{tpu_custom_call.1} parent=11 // pred_check_branch
          %567 = sbr.rel (%p565) target = $region40
        $region39: #{tpu_custom_call.1} parent=11 // pred_region
          %s569 = ssub.s32 256, 256
          %570 = vsyncadd [#allocation19], %s569
          %s571 = sshll.u32 [#allocation20], 4
          %s572 = int_to_ptr.vmem [resolvable:$true] %s571
          %577 = dma.hbm_to_vmem [thread:$0]  %s8, 256, %s572, [#allocation19], 64, 64, 4
        $region40: #{tpu_custom_call.1} parent=11 // pred_fallthru
          _
        // Predicated region
        $region41: #{tpu_custom_call.1} parent=11 // pred_check
          %p578 = pneg %p284
        $region42: #{tpu_custom_call.1} parent=11 // pred_check_branch
          %580 = sbr.rel (%p578) target = $region44
        $region43: #{tpu_custom_call.1} parent=11 // pred_region
          %s582 = ssub.s32 16, 16
          %583 = vsyncadd [#allocation22], %s582
          %s585 = sshll.u32 [#allocation21], 4
          %s586 = int_to_ptr.vmem [resolvable:$true] %s585
          %588 = dma.hbm_to_vmem [thread:$0]  %s9, 16, %s586, [#allocation22]
        $region44: #{tpu_custom_call.1} parent=11 // pred_fallthru
          _
        // Predicated region
        $region45: #{tpu_custom_call.1} parent=11 // pred_check
          %p589 = pneg %p305
        $region46: #{tpu_custom_call.1} parent=11 // pred_check_branch
          %591 = sbr.rel (%p589) target = $region48
        $region47: #{tpu_custom_call.1} parent=11 // pred_region
          %s593 = ssub.s32 256, 256
          %594 = vsyncadd [#allocation22], %s593
          %s595 = sshll.u32 [#allocation23], 4
          %s596 = int_to_ptr.vmem [resolvable:$true] %s595
          %601 = dma.hbm_to_vmem [thread:$0]  %s10, 256, %s596, [#allocation22], 64, 64, 4
        $region48: #{tpu_custom_call.1} parent=11 // pred_fallthru
          _
        // Predicated region
        $region49: #{tpu_custom_call.1} parent=11 // pred_check
          %p602 = pneg %p326
        $region50: #{tpu_custom_call.1} parent=11 // pred_check_branch
          %604 = sbr.rel (%p602) target = $region52
        $region51: #{tpu_custom_call.1} parent=11 // pred_region
          %s606 = ssub.s32 16, 16
          %607 = vsyncadd [#allocation25], %s606
          %s609 = sshll.u32 [#allocation24], 4
          %s610 = int_to_ptr.vmem [resolvable:$true] %s609
          %612 = dma.hbm_to_vmem [thread:$0]  %s11, 16, %s610, [#allocation25]
        $region52: #{tpu_custom_call.1} parent=11 // pred_fallthru
          _
        // Predicated region
        $region53: #{tpu_custom_call.1} parent=11 // pred_check
          %p613 = pneg %p347
        $region54: #{tpu_custom_call.1} parent=11 // pred_check_branch
          %615 = sbr.rel (%p613) target = $region56
        $region55: #{tpu_custom_call.1} parent=11 // pred_region
          %s617 = ssub.s32 16, 16
          %618 = vsyncadd [#allocation25], %s617
          %s620 = sshll.u32 [#allocation26], 4
          %s621 = int_to_ptr.vmem [resolvable:$true] %s620
          %623 = dma.hbm_to_vmem [thread:$0]  %s12, 16, %s621, [#allocation25]
        $region56: #{tpu_custom_call.1} parent=11 // pred_fallthru
          _
        // Predicated region
        $region57: #{tpu_custom_call.1} parent=11 // pred_check
          %p624 = pneg %p368
        $region58: #{tpu_custom_call.1} parent=11 // pred_check_branch
          %626 = sbr.rel (%p624) target = $region60
        $region59: #{tpu_custom_call.1} parent=11 // pred_region
          %s628 = ssub.s32 16, 16
          %629 = vsyncadd [#allocation28], %s628
          %s631 = sshll.u32 [#allocation27], 4
          %s632 = int_to_ptr.vmem [resolvable:$true] %s631
          %634 = dma.hbm_to_vmem [thread:$0]  %s13, 16, %s632, [#allocation28]
        $region60: #{tpu_custom_call.1} parent=11 // pred_fallthru
          _
        // Predicated region
        $region61: #{tpu_custom_call.1} parent=11 // pred_check
          %p635 = pneg %p389
        $region62: #{tpu_custom_call.1} parent=11 // pred_check_branch
          %637 = sbr.rel (%p635) target = $region64
        $region63: #{tpu_custom_call.1} parent=11 // pred_region
          %s639 = ssub.s32 256, 256
          %640 = vsyncadd [#allocation28], %s639
          %s641 = sshll.u32 [#allocation29], 4
          %s642 = int_to_ptr.vmem [resolvable:$true] %s641
          %647 = dma.hbm_to_vmem [thread:$0]  %s14, 256, %s642, [#allocation28], 64, 64, 4
        $region64: #{tpu_custom_call.1} parent=11 // pred_fallthru
          _
        // Predicated region
        $region65: #{tpu_custom_call.1} parent=11 // pred_check
          %p648 = pneg %p410
        $region66: #{tpu_custom_call.1} parent=11 // pred_check_branch
          %650 = sbr.rel (%p648) target = $region68
        $region67: #{tpu_custom_call.1} parent=11 // pred_region
          %s652 = ssub.s32 16, 16
          %653 = vsyncadd [#allocation31], %s652
          %s655 = sshll.u32 [#allocation30], 4
          %s656 = int_to_ptr.vmem [resolvable:$true] %s655
          %658 = dma.hbm_to_vmem [thread:$0]  %s15, 16, %s656, [#allocation31]
        $region68: #{tpu_custom_call.1} parent=11 // pred_fallthru
          _
        // Predicated region
        $region69: #{tpu_custom_call.1} parent=11 // pred_check
          %p659 = pneg %p431
        $region70: #{tpu_custom_call.1} parent=11 // pred_check_branch
          %661 = sbr.rel (%p659) target = $region72
        $region71: #{tpu_custom_call.1} parent=11 // pred_region
          %s663 = ssub.s32 512, 512
          %664 = vsyncadd [#allocation31], %s663
          %s665 = sshll.u32 [#allocation32], 4
          %s666 = int_to_ptr.vmem [resolvable:$true] %s665
          %671 = dma.hbm_to_vmem [thread:$0]  %s16, 512, %s666, [#allocation31], 64, 64, 4
        $region72: #{tpu_custom_call.1} parent=11 // pred_fallthru
          _
        // Predicated region
        $region73: #{tpu_custom_call.1} parent=11 // pred_check
          %p672 = pneg %p452
        $region74: #{tpu_custom_call.1} parent=11 // pred_check_branch
          %674 = sbr.rel (%p672) target = $region76
        $region75: #{tpu_custom_call.1} parent=11 // pred_region
          %s676 = ssub.s32 16, 16
          %677 = vsyncadd [#allocation34], %s676
          %s679 = sshll.u32 [#allocation33], 4
          %s680 = int_to_ptr.vmem [resolvable:$true] %s679
          %682 = dma.hbm_to_vmem [thread:$0]  %s17, 16, %s680, [#allocation34]
        $region76: #{tpu_custom_call.1} parent=11 // pred_fallthru
          _
      $region12: #{tpu_custom_call.1} parent=5 // pred_fallthru
        _
      %p683 = scmp.lt.s32.totalorder %s41, 2
      // Predicated region
      $region77: #{tpu_custom_call.1} parent=5 // pred_check
        %p684 = pneg %p683
      $region78: #{tpu_custom_call.1} parent=5 // pred_check_branch
        %686 = sbr.rel (%p684) target = $region80
      $region79: #{tpu_custom_call.1} parent=5 // pred_region
        // Predicated region
        $region81: #{tpu_custom_call.1} parent=79 // pred_check
          %p687 = pneg %p82
        $region82: #{tpu_custom_call.1} parent=79 // pred_check_branch
          %689 = sbr.rel (%p687) target = $region84
        $region83: #{tpu_custom_call.1} parent=79 // pred_region
          %s690 = sand.u32 %s72, 1
          %s691 = scalar_lea.sflag [#allocation7], %s690
          %s692 = sand.u32 %s72, 1
          %s693 = smul.addr %s692, 8
          %s694 = scalar_lea.vmem [#allocation6], %s693
          %s696 = ssub.s32 128, 128
          %697 = vsyncadd %s691, %s696
          %s698 = sadd.s32 %s49, %s48
          %s699 = smul.addr %s698, 128
          %s700 = scalar_lea.hbm %s0, %s699
          %s702 = sshll.u32 %s694, 4
          %s703 = int_to_ptr.vmem [resolvable:$true] %s702
          %705 = dma.hbm_to_vmem [thread:$0]  %s700, 128, %s703, %s691
        $region84: #{tpu_custom_call.1} parent=79 // pred_fallthru
          _
        // Predicated region
        $region85: #{tpu_custom_call.1} parent=79 // pred_check
          %p706 = pneg %p110
        $region86: #{tpu_custom_call.1} parent=79 // pred_check_branch
          %708 = sbr.rel (%p706) target = $region88
        $region87: #{tpu_custom_call.1} parent=79 // pred_region
          %s709 = sand.u32 %s41, 1
          %s710 = scalar_lea.sflag [#allocation10], %s709
          %s711 = sand.u32 %s100, 1
          %s712 = smul.addr %s711, 8
          %s713 = scalar_lea.vmem [#allocation9], %s712
          %s715 = ssub.s32 128, 128
          %716 = vsyncadd %s710, %s715
          %s717 = sadd.s32 %s50, %s48
          %s718 = smul.addr %s717, 128
          %s719 = scalar_lea.hbm %s1, %s718
          %s721 = sshll.u32 %s713, 4
          %s722 = int_to_ptr.vmem [resolvable:$true] %s721
          %724 = dma.hbm_to_vmem [thread:$0]  %s719, 128, %s722, %s710
        $region88: #{tpu_custom_call.1} parent=79 // pred_fallthru
          _
      $region80: #{tpu_custom_call.1} parent=5 // pred_fallthru
        _
      %p725 = scmp.le.s32.totalorder 1, %s41
      %p726 = scmp.lt.s32.totalorder %s41, 3
      %p727 = pnand %p725, %p726
      %p728 = pneg %p727
      // Predicated region
      $region89: #{tpu_custom_call.1} parent=5 // pred_check
        _
      $region90: #{tpu_custom_call.1} parent=5 // pred_check_branch
        %730 = sbr.rel (%p727) target = $region92
      $region91: #{tpu_custom_call.1} parent=5 // pred_region
        %s731 = ssub.s32 %s41, 1
        %s732 = sand.u32 %s75, 1
        %s733 = scalar_lea.sflag [#allocation7], %s732
        %s734 = sand.u32 %s75, 1
        %s735 = smul.addr %s734, 8
        %s736 = scalar_lea.vmem [#allocation6], %s735
        // Predicated region
        $region93: #{tpu_custom_call.1} parent=91 // pred_check
          %p737 = pneg %p88
        $region94: #{tpu_custom_call.1} parent=91 // pred_check_branch
          %739 = sbr.rel (%p737) target = $region96
        $region95: #{tpu_custom_call.1} parent=91 // pred_region
          %740 = dma.done %s733, 128
        $region96: #{tpu_custom_call.1} parent=91 // pred_fallthru
          _
        %s741 = sand.u32 %s46, 1
        %s742 = scalar_lea.sflag [#allocation10], %s741
        %s743 = sand.u32 %s103, 1
        %s744 = smul.addr %s743, 8
        %s745 = scalar_lea.vmem [#allocation9], %s744
        // Predicated region
        $region97: #{tpu_custom_call.1} parent=91 // pred_check
          %p746 = pneg %p116
        $region98: #{tpu_custom_call.1} parent=91 // pred_check_branch
          %748 = sbr.rel (%p746) target = $region100
        $region99: #{tpu_custom_call.1} parent=91 // pred_region
          %749 = dma.done %s742, 128
        $region100: #{tpu_custom_call.1} parent=91 // pred_fallthru
          _
        // Predicated region
        $region101: #{tpu_custom_call.1} parent=91 // pred_check
          %p750 = pneg %p137
        $region102: #{tpu_custom_call.1} parent=91 // pred_check_branch
          %752 = sbr.rel (%p750) target = $region104
        $region103: #{tpu_custom_call.1} parent=91 // pred_region
          %753 = dma.done [#allocation10], 16
        $region104: #{tpu_custom_call.1} parent=91 // pred_fallthru
          _
        // Predicated region
        $region105: #{tpu_custom_call.1} parent=91 // pred_check
          %p754 = pneg %p158
        $region106: #{tpu_custom_call.1} parent=91 // pred_check_branch
          %756 = sbr.rel (%p754) target = $region108
        $region107: #{tpu_custom_call.1} parent=91 // pred_region
          %757 = dma.done [#allocation13], 16
        $region108: #{tpu_custom_call.1} parent=91 // pred_fallthru
          _
        // Predicated region
        $region109: #{tpu_custom_call.1} parent=91 // pred_check
          %p758 = pneg %p179
        $region110: #{tpu_custom_call.1} parent=91 // pred_check_branch
          %760 = sbr.rel (%p758) target = $region112
        $region111: #{tpu_custom_call.1} parent=91 // pred_region
          %761 = dma.done [#allocation13], 256
        $region112: #{tpu_custom_call.1} parent=91 // pred_fallthru
          _
        // Predicated region
        $region113: #{tpu_custom_call.1} parent=91 // pred_check
          %p762 = pneg %p200
        $region114: #{tpu_custom_call.1} parent=91 // pred_check_branch
          %764 = sbr.rel (%p762) target = $region116
        $region115: #{tpu_custom_call.1} parent=91 // pred_region
          %765 = dma.done [#allocation16], 16
        $region116: #{tpu_custom_call.1} parent=91 // pred_fallthru
          _
        // Predicated region
        $region117: #{tpu_custom_call.1} parent=91 // pred_check
          %p766 = pneg %p221
        $region118: #{tpu_custom_call.1} parent=91 // pred_check_branch
          %768 = sbr.rel (%p766) target = $region120
        $region119: #{tpu_custom_call.1} parent=91 // pred_region
          %769 = dma.done [#allocation16], 256
        $region120: #{tpu_custom_call.1} parent=91 // pred_fallthru
          _
        // Predicated region
        $region121: #{tpu_custom_call.1} parent=91 // pred_check
          %p770 = pneg %p242
        $region122: #{tpu_custom_call.1} parent=91 // pred_check_branch
          %772 = sbr.rel (%p770) target = $region124
        $region123: #{tpu_custom_call.1} parent=91 // pred_region
          %773 = dma.done [#allocation19], 16
        $region124: #{tpu_custom_call.1} parent=91 // pred_fallthru
          _
        // Predicated region
        $region125: #{tpu_custom_call.1} parent=91 // pred_check
          %p774 = pneg %p263
        $region126: #{tpu_custom_call.1} parent=91 // pred_check_branch
          %776 = sbr.rel (%p774) target = $region128
        $region127: #{tpu_custom_call.1} parent=91 // pred_region
          %777 = dma.done [#allocation19], 256
        $region128: #{tpu_custom_call.1} parent=91 // pred_fallthru
          _
        // Predicated region
        $region129: #{tpu_custom_call.1} parent=91 // pred_check
          %p778 = pneg %p284
        $region130: #{tpu_custom_call.1} parent=91 // pred_check_branch
          %780 = sbr.rel (%p778) target = $region132
        $region131: #{tpu_custom_call.1} parent=91 // pred_region
          %781 = dma.done [#allocation22], 16
        $region132: #{tpu_custom_call.1} parent=91 // pred_fallthru
          _
        // Predicated region
        $region133: #{tpu_custom_call.1} parent=91 // pred_check
          %p782 = pneg %p305
        $region134: #{tpu_custom_call.1} parent=91 // pred_check_branch
          %784 = sbr.rel (%p782) target = $region136
        $region135: #{tpu_custom_call.1} parent=91 // pred_region
          %785 = dma.done [#allocation22], 256
        $region136: #{tpu_custom_call.1} parent=91 // pred_fallthru
          _
        // Predicated region
        $region137: #{tpu_custom_call.1} parent=91 // pred_check
          %p786 = pneg %p326
        $region138: #{tpu_custom_call.1} parent=91 // pred_check_branch
          %788 = sbr.rel (%p786) target = $region140
        $region139: #{tpu_custom_call.1} parent=91 // pred_region
          %789 = dma.done [#allocation25], 16
        $region140: #{tpu_custom_call.1} parent=91 // pred_fallthru
          _
        // Predicated region
        $region141: #{tpu_custom_call.1} parent=91 // pred_check
          %p790 = pneg %p347
        $region142: #{tpu_custom_call.1} parent=91 // pred_check_branch
          %792 = sbr.rel (%p790) target = $region144
        $region143: #{tpu_custom_call.1} parent=91 // pred_region
          %793 = dma.done [#allocation25], 16
        $region144: #{tpu_custom_call.1} parent=91 // pred_fallthru
          _
        // Predicated region
        $region145: #{tpu_custom_call.1} parent=91 // pred_check
          %p794 = pneg %p368
        $region146: #{tpu_custom_call.1} parent=91 // pred_check_branch
          %796 = sbr.rel (%p794) target = $region148
        $region147: #{tpu_custom_call.1} parent=91 // pred_region
          %797 = dma.done [#allocation28], 16
        $region148: #{tpu_custom_call.1} parent=91 // pred_fallthru
          _
        // Predicated region
        $region149: #{tpu_custom_call.1} parent=91 // pred_check
          %p798 = pneg %p389
        $region150: #{tpu_custom_call.1} parent=91 // pred_check_branch
          %800 = sbr.rel (%p798) target = $region152
        $region151: #{tpu_custom_call.1} parent=91 // pred_region
          %801 = dma.done [#allocation28], 256
        $region152: #{tpu_custom_call.1} parent=91 // pred_fallthru
          _
        // Predicated region
        $region153: #{tpu_custom_call.1} parent=91 // pred_check
          %p802 = pneg %p410
        $region154: #{tpu_custom_call.1} parent=91 // pred_check_branch
          %804 = sbr.rel (%p802) target = $region156
        $region155: #{tpu_custom_call.1} parent=91 // pred_region
          %805 = dma.done [#allocation31], 16
        $region156: #{tpu_custom_call.1} parent=91 // pred_fallthru
          _
        // Predicated region
        $region157: #{tpu_custom_call.1} parent=91 // pred_check
          %p806 = pneg %p431
        $region158: #{tpu_custom_call.1} parent=91 // pred_check_branch
          %808 = sbr.rel (%p806) target = $region160
        $region159: #{tpu_custom_call.1} parent=91 // pred_region
          %809 = dma.done [#allocation31], 512
        $region160: #{tpu_custom_call.1} parent=91 // pred_fallthru
          _
        // Predicated region
        $region161: #{tpu_custom_call.1} parent=91 // pred_check
          %p810 = pneg %p452
        $region162: #{tpu_custom_call.1} parent=91 // pred_check_branch
          %812 = sbr.rel (%p810) target = $region164
        $region163: #{tpu_custom_call.1} parent=91 // pred_region
          %813 = dma.done [#allocation34], 16
        $region164: #{tpu_custom_call.1} parent=91 // pred_fallthru
          _
        %s814 = sand.u32 %s75, 1
        %s815 = scalar_lea.sflag [#allocation7], %s814
        %s816 = sand.u32 %s75, 1
        %s817 = smul.addr %s816, 8
        %s818 = scalar_lea.vmem [#allocation6], %s817
        %p819 = pneg %p88
        %p820 = pneg %p85
        %s821 = sand.u32 %s46, 1
        %s822 = scalar_lea.sflag [#allocation10], %s821
        %s823 = sand.u32 %s103, 1
        %s824 = smul.addr %s823, 8
        %s825 = scalar_lea.vmem [#allocation9], %s824
        %p826 = pneg %p116
        %p827 = pneg %p113
        %p828 = pneg %p137
        %p829 = pneg %p134
        %p830 = pneg %p158
        %p831 = pneg %p155
        %p832 = pneg %p179
        %p833 = pneg %p176
        %p834 = pneg %p200
        %p835 = pneg %p197
        %p836 = pneg %p221
        %p837 = pneg %p218
        %p838 = pneg %p242
        %p839 = pneg %p239
        %p840 = pneg %p263
        %p841 = pneg %p260
        %p842 = pneg %p284
        %p843 = pneg %p281
        %p844 = pneg %p305
        %p845 = pneg %p302
        %p846 = pneg %p326
        %p847 = pneg %p323
        %p848 = pneg %p347
        %p849 = pneg %p344
        %p850 = pneg %p368
        %p851 = pneg %p365
        %p852 = pneg %p389
        %p853 = pneg %p386
        %p854 = pneg %p410
        %p855 = pneg %p407
        %p856 = pneg %p431
        %p857 = pneg %p428
        %p858 = pneg %p452
        %p859 = pneg %p449
        %p860 = pneg %p480
        %p861 = pneg %p477
        %s862 = sand.u32 %s467, 1
        %s863 = scalar_lea.sflag [#allocation8], %s862
        %s864 = sand.u32 %s467, 1
        %s865 = smul.addr %s864, 8
        %s866 = scalar_lea.vmem [#allocation35], %s865
        %v868 = vld [vmem:[#allocation11] sm:$0x1]
        %v869 = vld [vmem:[#allocation12] sm:$0x1]
        %p870 = scmp.eq.s32.totalorder %s53, 0
        // Predicated region
        $region165: #{tpu_custom_call.1} parent=91 // pred_check
          %p871 = pneg %p870
        $region166: #{tpu_custom_call.1} parent=91 // pred_check_branch
          %873 = sbr.rel (%p871) target = $region168
        $region167: #{tpu_custom_call.1} parent=91 // pred_region
          %v874 = vld [vmem:[%s736] sm:$0xff]
          %vm875 = vcmask 261120
          %v876 = vsel %vm875, %v874, 0.0
          %877 = vadd.xlane.f32.xlu0 %v876
          %v878 = vpop.xlane.xlu0 %877
          %v879 = vrcp.pop 32.0
          %v880 = vmul.f32 %v878, %v879
          %v881 = vsub.f32 %v874, %v880
          %v882 = vmul.f32 %v881, %v881
          %v883 = vsel %vm875, %v882, 0.0
          %884 = vadd.xlane.f32.xlu0 %v883
          %v885 = vpop.xlane.xlu0 %884
          %v886 = vmul.f32 %v885, %v879
          %v887 = vadd.f32 %v886, 1e-05
          %v888 = vrsqrt.pop %v887
          %v889 = vmul.f32 %v881, %v888
          %v891 = vlaneseq
          %v892 = vshrl.u32 %v891, 7
          %v893 = vsub.s32 0, %v892
          %v894 = vrot.slane %v868, %v893
          %v896 = vmul.f32 %v889, %v894
          %v898 = vlaneseq
          %v899 = vshrl.u32 %v898, 7
          %v900 = vsub.s32 0, %v899
          %v901 = vrot.slane %v869, %v900
          %v903 = vadd.f32 %v896, %v901
          %v904 = vpack.c.bf16 %v903, %v903
          %v905 = vld [vmem:[#allocation14] sm:$0xf]
          %v906 = vld [vmem:[#allocation14 + $0x4] sm:$0xf]
          %v907 = vld [vmem:[#allocation14 + $0x8] sm:$0xf]
          %v908 = vld [vmem:[#allocation14 + $0xc] sm:$0xf]
          %v909 = vld [vmem:[#allocation15] sm:$0x1]
          %v911 = vlaneseq
          %v912 = vshrl.u32 %v911, 7
          %v913 = vsub.s32 0, %v912
          %v914 = vrot.slane %v909, %v913
          %v920 = vunpack.c.l.b16 %v905
          %v921 = vunpack.c.l.b16 %v906
          %v922 = vunpack.c.l.b16 %v907
          %v923 = vunpack.c.l.b16 %v908
          %v924 = vpack.c.b16 %v921, %v920
          %v925 = vpack.c.b16 %v923, %v922
          %v929 = vsel %vm875, %v904, 0
          %931 = vmatprep.subr.bf16.mxu0 0
          %932 = vmatpush1.bf16.msra.mxu0 %v924
          %933 = vmatprep.subr.bf16.mxu0 0
          %934 = vmatpush1.bf16.msra.mxu0 %v925
          %935 = vmatprep.subr.bf16.mxu0 0
          %936 = vmatpush1.bf16.msra.mxu0 0
          %937 = vmatprep.subr.bf16.mxu0 0
          %938 = vmatpush1.bf16.msra.mxu0 0
          %939 = vmatprep.subr.bf16.mxu0 0
          %940 = vmatpush1.bf16.msra.mxu0 0
          %941 = vmatprep.subr.bf16.mxu0 0
          %942 = vmatpush1.bf16.msra.mxu0 0
          %943 = vmatprep.subr.bf16.mxu0 0
          %944 = vmatpush1.bf16.msra.mxu0 0
          %945 = vmatprep.subr.bf16.mxu0 0
          %946 = vmatpush1.bf16.msra.mxu0 0
          %947 = vmatprep.subr.bf16.mxu0 0
          %948 = vmatpush1.bf16.msra.mxu0 0
          %949 = vmatprep.subr.bf16.mxu0 0
          %950 = vmatpush1.bf16.msra.mxu0 0
          %951 = vmatprep.subr.bf16.mxu0 0
          %952 = vmatpush1.bf16.msra.mxu0 0
          %953 = vmatprep.subr.bf16.mxu0 0
          %954 = vmatpush1.bf16.msra.mxu0 0
          %955 = vmatprep.subr.bf16.mxu0 0
          %956 = vmatpush1.bf16.msra.mxu0 0
          %957 = vmatprep.subr.bf16.mxu0 0
          %958 = vmatpush1.bf16.msra.mxu0 0
          %959 = vmatprep.subr.bf16.mxu0 0
          %960 = vmatpush1.bf16.msra.mxu0 0
          %961 = vmatprep.subr.bf16.mxu0 0
          %962 = vmatpush1.bf16.msra.mxu0 0
          %963 = vmatprep.mubr.bf16.mxu0 0
          %964 = vmatmul.mubr.bf16.gmra.mrb[0].mxu0 %v929
          %v965 = vpop.f32.mrb[0].mxu0
          %v966 = vadd.f32 %v914, %v965
          %v967 = vpop.f32.mrb[0].mxu0
          %v968 = vpop.f32.mrb[0].mxu0
          %v969 = vpop.f32.mrb[0].mxu0
          %970 = vdwg.mxu0
          %v971 = vmul.f32 %v966, 0.35355338
          %973 = vrot.lane.b32.xlu0 %v971, 120
          %v974 = vpop.permute.xlu0 %973
          %976 = vrot.lane.b32.xlu0 %v971, 112
          %v977 = vpop.permute.xlu0 %976
          %979 = vrot.lane.b32.xlu0 %v971, 104
          %v980 = vpop.permute.xlu0 %979
          %v982 = vpack.c.bf16 %v971, %v971
          %v983 = vpack.c.bf16 %v974, %v974
          %v984 = vpack.c.bf16 %v977, %v977
          %v985 = vpack.c.bf16 %v980, %v980
          %vm986 = vcmask 60416
          %987 = vst.msk [vmem:[#allocation2] sm:$0xf] %vm986, %v982
          %988 = vst.msk [vmem:[#allocation2 + $0x4] sm:$0xf] %vm986, %v983
          %989 = vst.msk [vmem:[#allocation2 + $0x8] sm:$0xf] %vm986, %v984
          %990 = vst.msk [vmem:[#allocation2 + $0xc] sm:$0xf] %vm986, %v985
          %vm991 = vcmask 7168
          %992 = vst.msk [vmem:[#allocation3] sm:$0xff] %vm991, -1e+30
          %993 = vst.msk [vmem:[#allocation3 + $0x8] sm:$0xff] %vm991, -1e+30
          %994 = vst.msk [vmem:[#allocation3 + $0x10] sm:$0xff] %vm991, -1e+30
          %995 = vst.msk [vmem:[#allocation3 + $0x18] sm:$0xff] %vm991, -1e+30
          %996 = vst.msk [vmem:[#allocation4] sm:$0xff] %vm991, 0.0
          %997 = vst.msk [vmem:[#allocation4 + $0x8] sm:$0xff] %vm991, 0.0
          %998 = vst.msk [vmem:[#allocation4 + $0x10] sm:$0xff] %vm991, 0.0
          %999 = vst.msk [vmem:[#allocation4 + $0x18] sm:$0xff] %vm991, 0.0
          %vm1000 = vcmask 64512
          %1001 = vst.msk [vmem:[#allocation5] sm:$0xff] %vm1000, 0.0
          %1002 = vst.msk [vmem:[#allocation5 + $0x8] sm:$0xff] %vm1000, 0.0
          %1003 = vst.msk [vmem:[#allocation5 + $0x10] sm:$0xff] %vm1000, 0.0
          %1004 = vst.msk [vmem:[#allocation5 + $0x18] sm:$0xff] %vm1000, 0.0
        $region168: #{tpu_custom_call.1} parent=91 // pred_fallthru
          _
        %v1005 = vld [vmem:[%s745] sm:$0xff]
        %vm1006 = vcmask 261120
        %v1007 = vsel %vm1006, %v1005, 0.0
        %1008 = vadd.xlane.f32.xlu0 %v1007
        %v1009 = vpop.xlane.xlu0 %1008
        %v1010 = vrcp.pop 32.0
        %v1011 = vmul.f32 %v1009, %v1010
        %v1012 = vsub.f32 %v1005, %v1011
        %v1013 = vmul.f32 %v1012, %v1012
        %v1014 = vsel %vm1006, %v1013, 0.0
        %1015 = vadd.xlane.f32.xlu0 %v1014
        %v1016 = vpop.xlane.xlu0 %1015
        %v1017 = vmul.f32 %v1016, %v1010
        %v1018 = vadd.f32 %v1017, 1e-05
        %v1019 = vrsqrt.pop %v1018
        %v1020 = vmul.f32 %v1012, %v1019
        %v1022 = vlaneseq
        %v1023 = vshrl.u32 %v1022, 7
        %v1024 = vsub.s32 0, %v1023
        %v1025 = vrot.slane %v868, %v1024
        %v1027 = vmul.f32 %v1020, %v1025
        %v1029 = vlaneseq
        %v1030 = vshrl.u32 %v1029, 7
        %v1031 = vsub.s32 0, %v1030
        %v1032 = vrot.slane %v869, %v1031
        %v1034 = vadd.f32 %v1027, %v1032
        %v1035 = vpack.c.bf16 %v1034, %v1034
        %v1036 = vld [vmem:[#allocation17] sm:$0xf]
        %v1037 = vld [vmem:[#allocation17 + $0x4] sm:$0xf]
        %v1038 = vld [vmem:[#allocation17 + $0x8] sm:$0xf]
        %v1039 = vld [vmem:[#allocation17 + $0xc] sm:$0xf]
        %v1040 = vld [vmem:[#allocation18] sm:$0x1]
        %v1042 = vlaneseq
        %v1043 = vshrl.u32 %v1042, 7
        %v1044 = vsub.s32 0, %v1043
        %v1045 = vrot.slane %v1040, %v1044
        %v1051 = vunpack.c.l.b16 %v1036
        %v1052 = vunpack.c.l.b16 %v1037
        %v1053 = vunpack.c.l.b16 %v1038
        %v1054 = vunpack.c.l.b16 %v1039
        %v1055 = vpack.c.b16 %v1052, %v1051
        %v1056 = vpack.c.b16 %v1054, %v1053
        %v1060 = vsel %vm1006, %v1035, 0
        %1062 = vmatprep.subr.bf16.mxu0 0
        %1063 = vmatpush1.bf16.msra.mxu0 %v1055
        %1064 = vmatprep.subr.bf16.mxu0 0
        %1065 = vmatpush1.bf16.msra.mxu0 %v1056
        %1066 = vmatprep.subr.bf16.mxu0 0
        %1067 = vmatpush1.bf16.msra.mxu0 0
        %1068 = vmatprep.subr.bf16.mxu0 0
        %1069 = vmatpush1.bf16.msra.mxu0 0
        %1070 = vmatprep.subr.bf16.mxu0 0
        %1071 = vmatpush1.bf16.msra.mxu0 0
        %1072 = vmatprep.subr.bf16.mxu0 0
        %1073 = vmatpush1.bf16.msra.mxu0 0
        %1074 = vmatprep.subr.bf16.mxu0 0
        %1075 = vmatpush1.bf16.msra.mxu0 0
        %1076 = vmatprep.subr.bf16.mxu0 0
        %1077 = vmatpush1.bf16.msra.mxu0 0
        %1078 = vmatprep.subr.bf16.mxu0 0
        %1079 = vmatpush1.bf16.msra.mxu0 0
        %1080 = vmatprep.subr.bf16.mxu0 0
        %1081 = vmatpush1.bf16.msra.mxu0 0
        %1082 = vmatprep.subr.bf16.mxu0 0
        %1083 = vmatpush1.bf16.msra.mxu0 0
        %1084 = vmatprep.subr.bf16.mxu0 0
        %1085 = vmatpush1.bf16.msra.mxu0 0
        %1086 = vmatprep.subr.bf16.mxu0 0
        %1087 = vmatpush1.bf16.msra.mxu0 0
        %1088 = vmatprep.subr.bf16.mxu0 0
        %1089 = vmatpush1.bf16.msra.mxu0 0
        %1090 = vmatprep.subr.bf16.mxu0 0
        %1091 = vmatpush1.bf16.msra.mxu0 0
        %1092 = vmatprep.subr.bf16.mxu0 0
        %1093 = vmatpush1.bf16.msra.mxu0 0
        %1094 = vmatprep.mubr.bf16.mxu0 0
        %1095 = vmatmul.mubr.bf16.gmra.mrb[0].mxu0 %v1060
        %v1096 = vpop.f32.mrb[0].mxu0
        %v1097 = vadd.f32 %v1045, %v1096
        %v1098 = vpop.f32.mrb[0].mxu0
        %v1099 = vpop.f32.mrb[0].mxu0
        %v1100 = vpop.f32.mrb[0].mxu0
        %1101 = vdwg.mxu0
        %v1102 = vld [vmem:[#allocation20] sm:$0xf]
        %v1103 = vld [vmem:[#allocation20 + $0x4] sm:$0xf]
        %v1104 = vld [vmem:[#allocation20 + $0x8] sm:$0xf]
        %v1105 = vld [vmem:[#allocation20 + $0xc] sm:$0xf]
        %v1106 = vld [vmem:[#allocation21] sm:$0x1]
        %v1108 = vlaneseq
        %v1109 = vshrl.u32 %v1108, 7
        %v1110 = vsub.s32 0, %v1109
        %v1111 = vrot.slane %v1106, %v1110
        %v1117 = vunpack.c.l.b16 %v1102
        %v1118 = vunpack.c.l.b16 %v1103
        %v1119 = vunpack.c.l.b16 %v1104
        %v1120 = vunpack.c.l.b16 %v1105
        %v1121 = vpack.c.b16 %v1118, %v1117
        %v1122 = vpack.c.b16 %v1120, %v1119
        %1125 = vmatprep.subr.bf16.mxu0 0
        %1126 = vmatpush1.bf16.msra.mxu0 %v1121
        %1127 = vmatprep.subr.bf16.mxu0 0
        %1128 = vmatpush1.bf16.msra.mxu0 %v1122
        %1129 = vmatprep.subr.bf16.mxu0 0
        %1130 = vmatpush1.bf16.msra.mxu0 0
        %1131 = vmatprep.subr.bf16.mxu0 0
        %1132 = vmatpush1.bf16.msra.mxu0 0
        %1133 = vmatprep.subr.bf16.mxu0 0
        %1134 = vmatpush1.bf16.msra.mxu0 0
        %1135 = vmatprep.subr.bf16.mxu0 0
        %1136 = vmatpush1.bf16.msra.mxu0 0
        %1137 = vmatprep.subr.bf16.mxu0 0
        %1138 = vmatpush1.bf16.msra.mxu0 0
        %1139 = vmatprep.subr.bf16.mxu0 0
        %1140 = vmatpush1.bf16.msra.mxu0 0
        %1141 = vmatprep.subr.bf16.mxu0 0
        %1142 = vmatpush1.bf16.msra.mxu0 0
        %1143 = vmatprep.subr.bf16.mxu0 0
        %1144 = vmatpush1.bf16.msra.mxu0 0
        %1145 = vmatprep.subr.bf16.mxu0 0
        %1146 = vmatpush1.bf16.msra.mxu0 0
        %1147 = vmatprep.subr.bf16.mxu0 0
        %1148 = vmatpush1.bf16.msra.mxu0 0
        %1149 = vmatprep.subr.bf16.mxu0 0
        %1150 = vmatpush1.bf16.msra.mxu0 0
        %1151 = vmatprep.subr.bf16.mxu0 0
        %1152 = vmatpush1.bf16.msra.mxu0 0
        %1153 = vmatprep.subr.bf16.mxu0 0
        %1154 = vmatpush1.bf16.msra.mxu0 0
        %1155 = vmatprep.subr.bf16.mxu0 0
        %1156 = vmatpush1.bf16.msra.mxu0 0
        %1157 = vmatprep.mubr.bf16.mxu0 0
        %1158 = vmatmul.mubr.bf16.gmra.mrb[0].mxu0 %v1060
        %v1159 = vpop.f32.mrb[0].mxu0
        %v1160 = vadd.f32 %v1111, %v1159
        %v1161 = vpop.f32.mrb[0].mxu0
        %v1162 = vpop.f32.mrb[0].mxu0
        %v1163 = vpop.f32.mrb[0].mxu0
        %1164 = vdwg.mxu0
        %1166 = vrot.lane.b32.xlu0 %v1097, 120
        %v1167 = vpop.permute.xlu0 %1166
        %1169 = vrot.lane.b32.xlu0 %v1097, 112
        %v1170 = vpop.permute.xlu0 %1169
        %1172 = vrot.lane.b32.xlu0 %v1097, 104
        %v1173 = vpop.permute.xlu0 %1172
        %v1175 = vpack.c.bf16 %v1097, %v1097
        %v1176 = vpack.c.bf16 %v1167, %v1167
        %v1177 = vpack.c.bf16 %v1170, %v1170
        %v1178 = vpack.c.bf16 %v1173, %v1173
        %1180 = vrot.lane.b32.xlu0 %v1160, 120
        %v1181 = vpop.permute.xlu0 %1180
        %1183 = vrot.lane.b32.xlu0 %v1160, 112
        %v1184 = vpop.permute.xlu0 %1183
        %1186 = vrot.lane.b32.xlu0 %v1160, 104
        %v1187 = vpop.permute.xlu0 %1186
        %v1189 = vpack.c.bf16 %v1160, %v1160
        %v1190 = vpack.c.bf16 %v1181, %v1181
        %v1191 = vpack.c.bf16 %v1184, %v1184
        %v1192 = vpack.c.bf16 %v1187, %v1187
        %v1193 = vld [vmem:[#allocation2] sm:$0xf]
        %v1194 = vld [vmem:[#allocation2 + $0x4] sm:$0xf]
        %v1195 = vld [vmem:[#allocation2 + $0x8] sm:$0xf]
        %v1196 = vld [vmem:[#allocation2 + $0xc] sm:$0xf]
        %vm1197 = vcmask 64512
        %v1199 = vsel %vm1197, %v1193, 0
        %v1202 = vsel %vm1197, %v1175, 0
        %1204 = vmatprep.subr.bf16.mxu0 0
        %1205 = vmatpush1.bf16.xpose.msra.mxu0 %v1202
        %1206 = vmatprep.subr.bf16.mxu0 0
        %1207 = vmatpush1.bf16.xpose.msra.mxu0 0
        %1208 = vmatprep.subr.bf16.mxu0 0
        %1209 = vmatpush1.bf16.xpose.msra.mxu0 0
        %1210 = vmatprep.subr.bf16.mxu0 0
        %1211 = vmatpush1.bf16.xpose.msra.mxu0 0
        %1212 = vmatprep.subr.bf16.mxu0 0
        %1213 = vmatpush1.bf16.xpose.msra.mxu0 0
        %1214 = vmatprep.subr.bf16.mxu0 0
        %1215 = vmatpush1.bf16.xpose.msra.mxu0 0
        %1216 = vmatprep.subr.bf16.mxu0 0
        %1217 = vmatpush1.bf16.xpose.msra.mxu0 0
        %1218 = vmatprep.subr.bf16.mxu0 0
        %1219 = vmatpush1.bf16.xpose.msra.mxu0 0
        %1220 = vmatprep.subr.bf16.mxu0 0
        %1221 = vmatpush1.bf16.xpose.msra.mxu0 0
        %1222 = vmatprep.subr.bf16.mxu0 0
        %1223 = vmatpush1.bf16.xpose.msra.mxu0 0
        %1224 = vmatprep.subr.bf16.mxu0 0
        %1225 = vmatpush1.bf16.xpose.msra.mxu0 0
        %1226 = vmatprep.subr.bf16.mxu0 0
        %1227 = vmatpush1.bf16.xpose.msra.mxu0 0
        %1228 = vmatprep.subr.bf16.mxu0 0
        %1229 = vmatpush1.bf16.xpose.msra.mxu0 0
        %1230 = vmatprep.subr.bf16.mxu0 0
        %1231 = vmatpush1.bf16.xpose.msra.mxu0 0
        %1232 = vmatprep.subr.bf16.mxu0 0
        %1233 = vmatpush1.bf16.xpose.msra.mxu0 0
        %1234 = vmatprep.subr.bf16.mxu0 0
        %1235 = vmatpush1.bf16.xpose.msra.mxu0 0
        %1236 = vmatprep.mubr.bf16.mxu0 0
        %1237 = vmatmul.mubr.bf16.gmra.mrb[0].mxu0 %v1199
        %v1238 = vpop.f32.mrb[0].mxu0
        %v1239 = vadd.f32 0.0, %v1238
        %v1240 = vpop.f32.mrb[0].mxu0
        %v1241 = vpop.f32.mrb[0].mxu0
        %v1242 = vpop.f32.mrb[0].mxu0
        %1243 = vdwg.mxu0
        %v1245 = vsel %vm1197, %v1194, 0
        %v1248 = vsel %vm1197, %v1176, 0
        %1250 = vmatprep.subr.bf16.mxu0 0
        %1251 = vmatpush1.bf16.xpose.msra.mxu0 %v1248
        %1252 = vmatprep.subr.bf16.mxu0 0
        %1253 = vmatpush1.bf16.xpose.msra.mxu0 0
        %1254 = vmatprep.subr.bf16.mxu0 0
        %1255 = vmatpush1.bf16.xpose.msra.mxu0 0
        %1256 = vmatprep.subr.bf16.mxu0 0
        %1257 = vmatpush1.bf16.xpose.msra.mxu0 0
        %1258 = vmatprep.subr.bf16.mxu0 0
        %1259 = vmatpush1.bf16.xpose.msra.mxu0 0
        %1260 = vmatprep.subr.bf16.mxu0 0
        %1261 = vmatpush1.bf16.xpose.msra.mxu0 0
        %1262 = vmatprep.subr.bf16.mxu0 0
        %1263 = vmatpush1.bf16.xpose.msra.mxu0 0
        %1264 = vmatprep.subr.bf16.mxu0 0
        %1265 = vmatpush1.bf16.xpose.msra.mxu0 0
        %1266 = vmatprep.subr.bf16.mxu0 0
        %1267 = vmatpush1.bf16.xpose.msra.mxu0 0
        %1268 = vmatprep.subr.bf16.mxu0 0
        %1269 = vmatpush1.bf16.xpose.msra.mxu0 0
        %1270 = vmatprep.subr.bf16.mxu0 0
        %1271 = vmatpush1.bf16.xpose.msra.mxu0 0
        %1272 = vmatprep.subr.bf16.mxu0 0
        %1273 = vmatpush1.bf16.xpose.msra.mxu0 0
        %1274 = vmatprep.subr.bf16.mxu0 0
        %1275 = vmatpush1.bf16.xpose.msra.mxu0 0
        %1276 = vmatprep.subr.bf16.mxu0 0
        %1277 = vmatpush1.bf16.xpose.msra.mxu0 0
        %1278 = vmatprep.subr.bf16.mxu0 0
        %1279 = vmatpush1.bf16.xpose.msra.mxu0 0
        %1280 = vmatprep.subr.bf16.mxu0 0
        %1281 = vmatpush1.bf16.xpose.msra.mxu0 0
        %1282 = vmatprep.mubr.bf16.mxu0 0
        %1283 = vmatmul.mubr.bf16.gmra.mrb[0].mxu0 %v1245
        %v1284 = vpop.f32.mrb[0].mxu0
        %v1285 = vadd.f32 0.0, %v1284
        %v1286 = vpop.f32.mrb[0].mxu0
        %v1287 = vpop.f32.mrb[0].mxu0
        %v1288 = vpop.f32.mrb[0].mxu0
        %1289 = vdwg.mxu0
        %v1291 = vsel %vm1197, %v1195, 0
        %v1294 = vsel %vm1197, %v1177, 0
        %1296 = vmatprep.subr.bf16.mxu0 0
        %1297 = vmatpush1.bf16.xpose.msra.mxu0 %v1294
        %1298 = vmatprep.subr.bf16.mxu0 0
        %1299 = vmatpush1.bf16.xpose.msra.mxu0 0
        %1300 = vmatprep.subr.bf16.mxu0 0
        %1301 = vmatpush1.bf16.xpose.msra.mxu0 0
        %1302 = vmatprep.subr.bf16.mxu0 0
        %1303 = vmatpush1.bf16.xpose.msra.mxu0 0
        %1304 = vmatprep.subr.bf16.mxu0 0
        %1305 = vmatpush1.bf16.xpose.msra.mxu0 0
        %1306 = vmatprep.subr.bf16.mxu0 0
        %1307 = vmatpush1.bf16.xpose.msra.mxu0 0
        %1308 = vmatprep.subr.bf16.mxu0 0
        %1309 = vmatpush1.bf16.xpose.msra.mxu0 0
        %1310 = vmatprep.subr.bf16.mxu0 0
        %1311 = vmatpush1.bf16.xpose.msra.mxu0 0
        %1312 = vmatprep.subr.bf16.mxu0 0
        %1313 = vmatpush1.bf16.xpose.msra.mxu0 0
        %1314 = vmatprep.subr.bf16.mxu0 0
        %1315 = vmatpush1.bf16.xpose.msra.mxu0 0
        %1316 = vmatprep.subr.bf16.mxu0 0
        %1317 = vmatpush1.bf16.xpose.msra.mxu0 0
        %1318 = vmatprep.subr.bf16.mxu0 0
        %1319 = vmatpush1.bf16.xpose.msra.mxu0 0
        %1320 = vmatprep.subr.bf16.mxu0 0
        %1321 = vmatpush1.bf16.xpose.msra.mxu0 0
        %1322 = vmatprep.subr.bf16.mxu0 0
        %1323 = vmatpush1.bf16.xpose.msra.mxu0 0
        %1324 = vmatprep.subr.bf16.mxu0 0
        %1325 = vmatpush1.bf16.xpose.msra.mxu0 0
        %1326 = vmatprep.subr.bf16.mxu0 0
        %1327 = vmatpush1.bf16.xpose.msra.mxu0 0
        %1328 = vmatprep.mubr.bf16.mxu0 0
        %1329 = vmatmul.mubr.bf16.gmra.mrb[0].mxu0 %v1291
        %v1330 = vpop.f32.mrb[0].mxu0
        %v1331 = vadd.f32 0.0, %v1330
        %v1332 = vpop.f32.mrb[0].mxu0
        %v1333 = vpop.f32.mrb[0].mxu0
        %v1334 = vpop.f32.mrb[0].mxu0
        %1335 = vdwg.mxu0
        %v1337 = vsel %vm1197, %v1196, 0
        %v1340 = vsel %vm1197, %v1178, 0
        %1342 = vmatprep.subr.bf16.mxu0 0
        %1343 = vmatpush1.bf16.xpose.msra.mxu0 %v1340
        %1344 = vmatprep.subr.bf16.mxu0 0
        %1345 = vmatpush1.bf16.xpose.msra.mxu0 0
        %1346 = vmatprep.subr.bf16.mxu0 0
        %1347 = vmatpush1.bf16.xpose.msra.mxu0 0
        %1348 = vmatprep.subr.bf16.mxu0 0
        %1349 = vmatpush1.bf16.xpose.msra.mxu0 0
        %1350 = vmatprep.subr.bf16.mxu0 0
        %1351 = vmatpush1.bf16.xpose.msra.mxu0 0
        %1352 = vmatprep.subr.bf16.mxu0 0
        %1353 = vmatpush1.bf16.xpose.msra.mxu0 0
        %1354 = vmatprep.subr.bf16.mxu0 0
        %1355 = vmatpush1.bf16.xpose.msra.mxu0 0
        %1356 = vmatprep.subr.bf16.mxu0 0
        %1357 = vmatpush1.bf16.xpose.msra.mxu0 0
        %1358 = vmatprep.subr.bf16.mxu0 0
        %1359 = vmatpush1.bf16.xpose.msra.mxu0 0
        %1360 = vmatprep.subr.bf16.mxu0 0
        %1361 = vmatpush1.bf16.xpose.msra.mxu0 0
        %1362 = vmatprep.subr.bf16.mxu0 0
        %1363 = vmatpush1.bf16.xpose.msra.mxu0 0
        %1364 = vmatprep.subr.bf16.mxu0 0
        %1365 = vmatpush1.bf16.xpose.msra.mxu0 0
        %1366 = vmatprep.subr.bf16.mxu0 0
        %1367 = vmatpush1.bf16.xpose.msra.mxu0 0
        %1368 = vmatprep.subr.bf16.mxu0 0
        %1369 = vmatpush1.bf16.xpose.msra.mxu0 0
        %1370 = vmatprep.subr.bf16.mxu0 0
        %1371 = vmatpush1.bf16.xpose.msra.mxu0 0
        %1372 = vmatprep.subr.bf16.mxu0 0
        %1373 = vmatpush1.bf16.xpose.msra.mxu0 0
        %1374 = vmatprep.mubr.bf16.mxu0 0
        %1375 = vmatmul.mubr.bf16.gmra.mrb[0].mxu0 %v1337
        %v1376 = vpop.f32.mrb[0].mxu0
        %v1377 = vadd.f32 0.0, %v1376
        %v1378 = vpop.f32.mrb[0].mxu0
        %v1379 = vpop.f32.mrb[0].mxu0
        %v1380 = vpop.f32.mrb[0].mxu0
        %1381 = vdwg.mxu0
        %v1382 = vld [vmem:[#allocation3] sm:$0xff]
        %v1383 = vld [vmem:[#allocation3 + $0x8] sm:$0xff]
        %v1384 = vld [vmem:[#allocation3 + $0x10] sm:$0xff]
        %v1385 = vld [vmem:[#allocation3 + $0x18] sm:$0xff]
        %v1386 = vsel %vm1197, %v1239, -inf
        %1387 = vmax.xlane.f32.xlu0 %v1386
        %v1388 = vpop.xlane.xlu0 %1387
        %v1389 = vsel %vm1197, %v1285, -inf
        %1390 = vmax.xlane.f32.xlu0 %v1389
        %v1391 = vpop.xlane.xlu0 %1390
        %v1392 = vsel %vm1197, %v1331, -inf
        %1393 = vmax.xlane.f32.xlu0 %v1392
        %v1394 = vpop.xlane.xlu0 %1393
        %v1395 = vsel %vm1197, %v1377, -inf
        %1396 = vmax.xlane.f32.xlu0 %v1395
        %v1397 = vpop.xlane.xlu0 %1396
        %v1398 = vmax.f32 %v1382, %v1388
        %v1399 = vmax.f32 %v1383, %v1391
        %v1400 = vmax.f32 %v1384, %v1394
        %v1401 = vmax.f32 %v1385, %v1397
        %v1402 = vsub.f32 %v1382, %v1398
        %v1403 = vsub.f32 %v1383, %v1399
        %v1404 = vsub.f32 %v1384, %v1400
        %v1405 = vsub.f32 %v1385, %v1401
        %v1406 = vmul.f32 %v1402, 1.442695
        %v1407 = vpow.pop %v1406
        %v1408 = vmul.f32 %v1403, 1.442695
        %v1409 = vpow.pop %v1408
        %v1410 = vmul.f32 %v1404, 1.442695
        %v1411 = vpow.pop %v1410
        %v1412 = vmul.f32 %v1405, 1.442695
        %v1413 = vpow.pop %v1412
        %1415 = vset.pattern.permute.xlu0 0
        %1416 = vperm.xlu0 %1415, %v1398
        %v1417 = vpop.permute.xlu0 %1416
        %1420 = vset.pattern.permute.xlu0 0
        %1421 = vperm.xlu0 %1420, %v1399
        %v1422 = vpop.permute.xlu0 %1421
        %1425 = vset.pattern.permute.xlu0 0
        %1426 = vperm.xlu0 %1425, %v1400
        %v1427 = vpop.permute.xlu0 %1426
        %1430 = vset.pattern.permute.xlu0 0
        %1431 = vperm.xlu0 %1430, %v1401
        %v1432 = vpop.permute.xlu0 %1431
        %v1434 = vsub.f32 %v1239, %v1417
        %v1435 = vsub.f32 %v1285, %v1422
        %v1436 = vsub.f32 %v1331, %v1427
        %v1437 = vsub.f32 %v1377, %v1432
        %v1438 = vmul.f32 %v1434, 1.442695
        %v1439 = vpow.pop %v1438
        %v1440 = vmul.f32 %v1435, 1.442695
        %v1441 = vpow.pop %v1440
        %v1442 = vmul.f32 %v1436, 1.442695
        %v1443 = vpow.pop %v1442
        %v1444 = vmul.f32 %v1437, 1.442695
        %v1445 = vpow.pop %v1444
        %v1446 = vld [vmem:[#allocation4] sm:$0xff]
        %v1447 = vld [vmem:[#allocation4 + $0x8] sm:$0xff]
        %v1448 = vld [vmem:[#allocation4 + $0x10] sm:$0xff]
        %v1449 = vld [vmem:[#allocation4 + $0x18] sm:$0xff]
        %v1450 = vmul.f32 %v1407, %v1446
        %v1451 = vmul.f32 %v1409, %v1447
        %v1452 = vmul.f32 %v1411, %v1448
        %v1453 = vmul.f32 %v1413, %v1449
        %v1454 = vsel %vm1197, %v1439, 0.0
        %1455 = vadd.xlane.f32.xlu0 %v1454
        %v1456 = vpop.xlane.xlu0 %1455
        %v1457 = vsel %vm1197, %v1441, 0.0
        %1458 = vadd.xlane.f32.xlu0 %v1457
        %v1459 = vpop.xlane.xlu0 %1458
        %v1460 = vsel %vm1197, %v1443, 0.0
        %1461 = vadd.xlane.f32.xlu0 %v1460
        %v1462 = vpop.xlane.xlu0 %1461
        %v1463 = vsel %vm1197, %v1445, 0.0
        %1464 = vadd.xlane.f32.xlu0 %v1463
        %v1465 = vpop.xlane.xlu0 %1464
        %v1466 = vadd.f32 %v1450, %v1456
        %v1467 = vadd.f32 %v1451, %v1459
        %v1468 = vadd.f32 %v1452, %v1462
        %v1469 = vadd.f32 %v1453, %v1465
        %vm1470 = vcmask 7168
        %1471 = vst.msk [vmem:[#allocation4] sm:$0xff] %vm1470, %v1466
        %1472 = vst.msk [vmem:[#allocation4 + $0x8] sm:$0xff] %vm1470, %v1467
        %1473 = vst.msk [vmem:[#allocation4 + $0x10] sm:$0xff] %vm1470, %v1468
        %1474 = vst.msk [vmem:[#allocation4 + $0x18] sm:$0xff] %vm1470, %v1469
        %v1475 = vpack.c.bf16 %v1439, %v1439
        %v1476 = vpack.c.bf16 %v1441, %v1441
        %v1477 = vpack.c.bf16 %v1443, %v1443
        %v1478 = vpack.c.bf16 %v1445, %v1445
        %v1480 = vsel %vm1197, %v1475, 0
        %vm1482 = vcmask 1043456
        %v1484 = vsel %vm1482, %v1189, 0
        %1486 = vmatprep.subr.bf16.mxu0 0
        %1487 = vmatpush1.bf16.msra.mxu0 %v1484
        %1488 = vmatprep.subr.bf16.mxu0 0
        %1489 = vmatpush1.bf16.msra.mxu0 0
        %1490 = vmatprep.subr.bf16.mxu0 0
        %1491 = vmatpush1.bf16.msra.mxu0 0
        %1492 = vmatprep.subr.bf16.mxu0 0
        %1493 = vmatpush1.bf16.msra.mxu0 0
        %1494 = vmatprep.subr.bf16.mxu0 0
        %1495 = vmatpush1.bf16.msra.mxu0 0
        %1496 = vmatprep.subr.bf16.mxu0 0
        %1497 = vmatpush1.bf16.msra.mxu0 0
        %1498 = vmatprep.subr.bf16.mxu0 0
        %1499 = vmatpush1.bf16.msra.mxu0 0
        %1500 = vmatprep.subr.bf16.mxu0 0
        %1501 = vmatpush1.bf16.msra.mxu0 0
        %1502 = vmatprep.subr.bf16.mxu0 0
        %1503 = vmatpush1.bf16.msra.mxu0 0
        %1504 = vmatprep.subr.bf16.mxu0 0
        %1505 = vmatpush1.bf16.msra.mxu0 0
        %1506 = vmatprep.subr.bf16.mxu0 0
        %1507 = vmatpush1.bf16.msra.mxu0 0
        %1508 = vmatprep.subr.bf16.mxu0 0
        %1509 = vmatpush1.bf16.msra.mxu0 0
        %1510 = vmatprep.subr.bf16.mxu0 0
        %1511 = vmatpush1.bf16.msra.mxu0 0
        %1512 = vmatprep.subr.bf16.mxu0 0
        %1513 = vmatpush1.bf16.msra.mxu0 0
        %1514 = vmatprep.subr.bf16.mxu0 0
        %1515 = vmatpush1.bf16.msra.mxu0 0
        %1516 = vmatprep.subr.bf16.mxu0 0
        %1517 = vmatpush1.bf16.msra.mxu0 0
        %1518 = vmatprep.mubr.bf16.mxu0 0
        %1519 = vmatmul.mubr.bf16.gmra.mrb[0].mxu0 %v1480
        %v1520 = vpop.f32.mrb[0].mxu0
        %v1521 = vadd.f32 0.0, %v1520
        %v1522 = vpop.f32.mrb[0].mxu0
        %v1523 = vpop.f32.mrb[0].mxu0
        %v1524 = vpop.f32.mrb[0].mxu0
        %1525 = vdwg.mxu0
        %v1527 = vsel %vm1197, %v1476, 0
        %v1530 = vsel %vm1482, %v1190, 0
        %1532 = vmatprep.subr.bf16.mxu0 0
        %1533 = vmatpush1.bf16.msra.mxu0 %v1530
        %1534 = vmatprep.subr.bf16.mxu0 0
        %1535 = vmatpush1.bf16.msra.mxu0 0
        %1536 = vmatprep.subr.bf16.mxu0 0
        %1537 = vmatpush1.bf16.msra.mxu0 0
        %1538 = vmatprep.subr.bf16.mxu0 0
        %1539 = vmatpush1.bf16.msra.mxu0 0
        %1540 = vmatprep.subr.bf16.mxu0 0
        %1541 = vmatpush1.bf16.msra.mxu0 0
        %1542 = vmatprep.subr.bf16.mxu0 0
        %1543 = vmatpush1.bf16.msra.mxu0 0
        %1544 = vmatprep.subr.bf16.mxu0 0
        %1545 = vmatpush1.bf16.msra.mxu0 0
        %1546 = vmatprep.subr.bf16.mxu0 0
        %1547 = vmatpush1.bf16.msra.mxu0 0
        %1548 = vmatprep.subr.bf16.mxu0 0
        %1549 = vmatpush1.bf16.msra.mxu0 0
        %1550 = vmatprep.subr.bf16.mxu0 0
        %1551 = vmatpush1.bf16.msra.mxu0 0
        %1552 = vmatprep.subr.bf16.mxu0 0
        %1553 = vmatpush1.bf16.msra.mxu0 0
        %1554 = vmatprep.subr.bf16.mxu0 0
        %1555 = vmatpush1.bf16.msra.mxu0 0
        %1556 = vmatprep.subr.bf16.mxu0 0
        %1557 = vmatpush1.bf16.msra.mxu0 0
        %1558 = vmatprep.subr.bf16.mxu0 0
        %1559 = vmatpush1.bf16.msra.mxu0 0
        %1560 = vmatprep.subr.bf16.mxu0 0
        %1561 = vmatpush1.bf16.msra.mxu0 0
        %1562 = vmatprep.subr.bf16.mxu0 0
        %1563 = vmatpush1.bf16.msra.mxu0 0
        %1564 = vmatprep.mubr.bf16.mxu0 0
        %1565 = vmatmul.mubr.bf16.gmra.mrb[0].mxu0 %v1527
        %v1566 = vpop.f32.mrb[0].mxu0
        %v1567 = vadd.f32 0.0, %v1566
        %v1568 = vpop.f32.mrb[0].mxu0
        %v1569 = vpop.f32.mrb[0].mxu0
        %v1570 = vpop.f32.mrb[0].mxu0
        %1571 = vdwg.mxu0
        %v1573 = vsel %vm1197, %v1477, 0
        %v1576 = vsel %vm1482, %v1191, 0
        %1578 = vmatprep.subr.bf16.mxu0 0
        %1579 = vmatpush1.bf16.msra.mxu0 %v1576
        %1580 = vmatprep.subr.bf16.mxu0 0
        %1581 = vmatpush1.bf16.msra.mxu0 0
        %1582 = vmatprep.subr.bf16.mxu0 0
        %1583 = vmatpush1.bf16.msra.mxu0 0
        %1584 = vmatprep.subr.bf16.mxu0 0
        %1585 = vmatpush1.bf16.msra.mxu0 0
        %1586 = vmatprep.subr.bf16.mxu0 0
        %1587 = vmatpush1.bf16.msra.mxu0 0
        %1588 = vmatprep.subr.bf16.mxu0 0
        %1589 = vmatpush1.bf16.msra.mxu0 0
        %1590 = vmatprep.subr.bf16.mxu0 0
        %1591 = vmatpush1.bf16.msra.mxu0 0
        %1592 = vmatprep.subr.bf16.mxu0 0
        %1593 = vmatpush1.bf16.msra.mxu0 0
        %1594 = vmatprep.subr.bf16.mxu0 0
        %1595 = vmatpush1.bf16.msra.mxu0 0
        %1596 = vmatprep.subr.bf16.mxu0 0
        %1597 = vmatpush1.bf16.msra.mxu0 0
        %1598 = vmatprep.subr.bf16.mxu0 0
        %1599 = vmatpush1.bf16.msra.mxu0 0
        %1600 = vmatprep.subr.bf16.mxu0 0
        %1601 = vmatpush1.bf16.msra.mxu0 0
        %1602 = vmatprep.subr.bf16.mxu0 0
        %1603 = vmatpush1.bf16.msra.mxu0 0
        %1604 = vmatprep.subr.bf16.mxu0 0
        %1605 = vmatpush1.bf16.msra.mxu0 0
        %1606 = vmatprep.subr.bf16.mxu0 0
        %1607 = vmatpush1.bf16.msra.mxu0 0
        %1608 = vmatprep.subr.bf16.mxu0 0
        %1609 = vmatpush1.bf16.msra.mxu0 0
        %1610 = vmatprep.mubr.bf16.mxu0 0
        %1611 = vmatmul.mubr.bf16.gmra.mrb[0].mxu0 %v1573
        %v1612 = vpop.f32.mrb[0].mxu0
        %v1613 = vadd.f32 0.0, %v1612
        %v1614 = vpop.f32.mrb[0].mxu0
        %v1615 = vpop.f32.mrb[0].mxu0
        %v1616 = vpop.f32.mrb[0].mxu0
        %1617 = vdwg.mxu0
        %v1619 = vsel %vm1197, %v1478, 0
        %v1622 = vsel %vm1482, %v1192, 0
        %1624 = vmatprep.subr.bf16.mxu0 0
        %1625 = vmatpush1.bf16.msra.mxu0 %v1622
        %1626 = vmatprep.subr.bf16.mxu0 0
        %1627 = vmatpush1.bf16.msra.mxu0 0
        %1628 = vmatprep.subr.bf16.mxu0 0
        %1629 = vmatpush1.bf16.msra.mxu0 0
        %1630 = vmatprep.subr.bf16.mxu0 0
        %1631 = vmatpush1.bf16.msra.mxu0 0
        %1632 = vmatprep.subr.bf16.mxu0 0
        %1633 = vmatpush1.bf16.msra.mxu0 0
        %1634 = vmatprep.subr.bf16.mxu0 0
        %1635 = vmatpush1.bf16.msra.mxu0 0
        %1636 = vmatprep.subr.bf16.mxu0 0
        %1637 = vmatpush1.bf16.msra.mxu0 0
        %1638 = vmatprep.subr.bf16.mxu0 0
        %1639 = vmatpush1.bf16.msra.mxu0 0
        %1640 = vmatprep.subr.bf16.mxu0 0
        %1641 = vmatpush1.bf16.msra.mxu0 0
        %1642 = vmatprep.subr.bf16.mxu0 0
        %1643 = vmatpush1.bf16.msra.mxu0 0
        %1644 = vmatprep.subr.bf16.mxu0 0
        %1645 = vmatpush1.bf16.msra.mxu0 0
        %1646 = vmatprep.subr.bf16.mxu0 0
        %1647 = vmatpush1.bf16.msra.mxu0 0
        %1648 = vmatprep.subr.bf16.mxu0 0
        %1649 = vmatpush1.bf16.msra.mxu0 0
        %1650 = vmatprep.subr.bf16.mxu0 0
        %1651 = vmatpush1.bf16.msra.mxu0 0
        %1652 = vmatprep.subr.bf16.mxu0 0
        %1653 = vmatpush1.bf16.msra.mxu0 0
        %1654 = vmatprep.subr.bf16.mxu0 0
        %1655 = vmatpush1.bf16.msra.mxu0 0
        %1656 = vmatprep.mubr.bf16.mxu0 0
        %1657 = vmatmul.mubr.bf16.gmra.mrb[0].mxu0 %v1619
        %v1658 = vpop.f32.mrb[0].mxu0
        %v1659 = vadd.f32 0.0, %v1658
        %v1660 = vpop.f32.mrb[0].mxu0
        %v1661 = vpop.f32.mrb[0].mxu0
        %v1662 = vpop.f32.mrb[0].mxu0
        %1663 = vdwg.mxu0
        %v1664 = vld [vmem:[#allocation5] sm:$0xff]
        %v1665 = vld [vmem:[#allocation5 + $0x8] sm:$0xff]
        %v1666 = vld [vmem:[#allocation5 + $0x10] sm:$0xff]
        %v1667 = vld [vmem:[#allocation5 + $0x18] sm:$0xff]
        %1669 = vset.pattern.permute.xlu0 0
        %1670 = vperm.xlu0 %1669, %v1407
        %v1671 = vpop.permute.xlu0 %1670
        %1674 = vset.pattern.permute.xlu0 0
        %1675 = vperm.xlu0 %1674, %v1409
        %v1676 = vpop.permute.xlu0 %1675
        %1679 = vset.pattern.permute.xlu0 0
        %1680 = vperm.xlu0 %1679, %v1411
        %v1681 = vpop.permute.xlu0 %1680
        %1684 = vset.pattern.permute.xlu0 0
        %1685 = vperm.xlu0 %1684, %v1413
        %v1686 = vpop.permute.xlu0 %1685
        %v1688 = vmul.f32 %v1671, %v1664
        %v1689 = vmul.f32 %v1676, %v1665
        %v1690 = vmul.f32 %v1681, %v1666
        %v1691 = vmul.f32 %v1686, %v1667
        %v1692 = vadd.f32 %v1688, %v1521
        %v1693 = vadd.f32 %v1689, %v1567
        %v1694 = vadd.f32 %v1690, %v1613
        %v1695 = vadd.f32 %v1691, %v1659
        %1696 = vst.msk [vmem:[#allocation5] sm:$0xff] %vm1197, %v1692
        %1697 = vst.msk [vmem:[#allocation5 + $0x8] sm:$0xff] %vm1197, %v1693
        %1698 = vst.msk [vmem:[#allocation5 + $0x10] sm:$0xff] %vm1197, %v1694
        %1699 = vst.msk [vmem:[#allocation5 + $0x18] sm:$0xff] %vm1197, %v1695
        %1700 = vst.msk [vmem:[#allocation3] sm:$0xff] %vm1470, %v1398
        %1701 = vst.msk [vmem:[#allocation3 + $0x8] sm:$0xff] %vm1470, %v1399
        %1702 = vst.msk [vmem:[#allocation3 + $0x10] sm:$0xff] %vm1470, %v1400
        %1703 = vst.msk [vmem:[#allocation3 + $0x18] sm:$0xff] %vm1470, %v1401
        // Predicated region
        $region169: #{tpu_custom_call.1} parent=91 // pred_check
          %p1704 = pneg %p870
        $region170: #{tpu_custom_call.1} parent=91 // pred_check_branch
          %1706 = sbr.rel (%p1704) target = $region172
        $region171: #{tpu_custom_call.1} parent=91 // pred_region
          %v1707 = vld [vmem:[%s736] sm:$0xff]
          %v1708 = vld [vmem:[#allocation5] sm:$0xff]
          %v1709 = vld [vmem:[#allocation5 + $0x8] sm:$0xff]
          %v1710 = vld [vmem:[#allocation5 + $0x10] sm:$0xff]
          %v1711 = vld [vmem:[#allocation5 + $0x18] sm:$0xff]
          %v1712 = vld [vmem:[#allocation4] sm:$0xff]
          %v1713 = vld [vmem:[#allocation4 + $0x8] sm:$0xff]
          %v1714 = vld [vmem:[#allocation4 + $0x10] sm:$0xff]
          %v1715 = vld [vmem:[#allocation4 + $0x18] sm:$0xff]
          %v1716 = vrcp.pop %v1712
          %v1717 = vrcp.pop %v1713
          %v1718 = vrcp.pop %v1714
          %v1719 = vrcp.pop %v1715
          %1721 = vset.pattern.permute.xlu0 0
          %1722 = vperm.xlu0 %1721, %v1716
          %v1723 = vpop.permute.xlu0 %1722
          %1726 = vset.pattern.permute.xlu0 0
          %1727 = vperm.xlu0 %1726, %v1717
          %v1728 = vpop.permute.xlu0 %1727
          %1731 = vset.pattern.permute.xlu0 0
          %1732 = vperm.xlu0 %1731, %v1718
          %v1733 = vpop.permute.xlu0 %1732
          %1736 = vset.pattern.permute.xlu0 0
          %1737 = vperm.xlu0 %1736, %v1719
          %v1738 = vpop.permute.xlu0 %1737
          %v1740 = vmul.f32 %v1708, %v1723
          %v1741 = vmul.f32 %v1709, %v1728
          %v1742 = vmul.f32 %v1710, %v1733
          %v1743 = vmul.f32 %v1711, %v1738
          %v1744 = vpack.c.bf16 %v1740, %v1740
          %v1745 = vpack.c.bf16 %v1741, %v1741
          %v1746 = vpack.c.bf16 %v1742, %v1742
          %v1747 = vpack.c.bf16 %v1743, %v1743
          %v1748 = vld [vmem:[#allocation23] sm:$0xf]
          %v1749 = vld [vmem:[#allocation23 + $0x4] sm:$0xf]
          %v1750 = vld [vmem:[#allocation23 + $0x8] sm:$0xf]
          %v1751 = vld [vmem:[#allocation23 + $0xc] sm:$0xf]
          %v1753 = vsel %vm1197, %v1744, 0
          %v1756 = vsel %vm1482, %v1748, 0
          %1758 = vmatprep.subr.bf16.mxu0 0
          %1759 = vmatpush1.bf16.msra.mxu0 %v1756
          %1760 = vmatprep.subr.bf16.mxu0 0
          %1761 = vmatpush1.bf16.msra.mxu0 0
          %1762 = vmatprep.subr.bf16.mxu0 0
          %1763 = vmatpush1.bf16.msra.mxu0 0
          %1764 = vmatprep.subr.bf16.mxu0 0
          %1765 = vmatpush1.bf16.msra.mxu0 0
          %1766 = vmatprep.subr.bf16.mxu0 0
          %1767 = vmatpush1.bf16.msra.mxu0 0
          %1768 = vmatprep.subr.bf16.mxu0 0
          %1769 = vmatpush1.bf16.msra.mxu0 0
          %1770 = vmatprep.subr.bf16.mxu0 0
          %1771 = vmatpush1.bf16.msra.mxu0 0
          %1772 = vmatprep.subr.bf16.mxu0 0
          %1773 = vmatpush1.bf16.msra.mxu0 0
          %1774 = vmatprep.subr.bf16.mxu0 0
          %1775 = vmatpush1.bf16.msra.mxu0 0
          %1776 = vmatprep.subr.bf16.mxu0 0
          %1777 = vmatpush1.bf16.msra.mxu0 0
          %1778 = vmatprep.subr.bf16.mxu0 0
          %1779 = vmatpush1.bf16.msra.mxu0 0
          %1780 = vmatprep.subr.bf16.mxu0 0
          %1781 = vmatpush1.bf16.msra.mxu0 0
          %1782 = vmatprep.subr.bf16.mxu0 0
          %1783 = vmatpush1.bf16.msra.mxu0 0
          %1784 = vmatprep.subr.bf16.mxu0 0
          %1785 = vmatpush1.bf16.msra.mxu0 0
          %1786 = vmatprep.subr.bf16.mxu0 0
          %1787 = vmatpush1.bf16.msra.mxu0 0
          %1788 = vmatprep.subr.bf16.mxu0 0
          %1789 = vmatpush1.bf16.msra.mxu0 0
          %1790 = vmatprep.mubr.bf16.mxu0 0
          %1791 = vmatmul.mubr.bf16.gmra.mrb[0].mxu0 %v1753
          %v1792 = vpop.f32.mrb[0].mxu0
          %v1793 = vadd.f32 0.0, %v1792
          %v1794 = vpop.f32.mrb[0].mxu0
          %v1795 = vpop.f32.mrb[0].mxu0
          %v1796 = vpop.f32.mrb[0].mxu0
          %1797 = vdwg.mxu0
          %v1799 = vsel %vm1197, %v1745, 0
          %v1802 = vsel %vm1482, %v1749, 0
          %1804 = vmatprep.subr.bf16.mxu0 0
          %1805 = vmatpush1.bf16.msra.mxu0 %v1802
          %1806 = vmatprep.subr.bf16.mxu0 0
          %1807 = vmatpush1.bf16.msra.mxu0 0
          %1808 = vmatprep.subr.bf16.mxu0 0
          %1809 = vmatpush1.bf16.msra.mxu0 0
          %1810 = vmatprep.subr.bf16.mxu0 0
          %1811 = vmatpush1.bf16.msra.mxu0 0
          %1812 = vmatprep.subr.bf16.mxu0 0
          %1813 = vmatpush1.bf16.msra.mxu0 0
          %1814 = vmatprep.subr.bf16.mxu0 0
          %1815 = vmatpush1.bf16.msra.mxu0 0
          %1816 = vmatprep.subr.bf16.mxu0 0
          %1817 = vmatpush1.bf16.msra.mxu0 0
          %1818 = vmatprep.subr.bf16.mxu0 0
          %1819 = vmatpush1.bf16.msra.mxu0 0
          %1820 = vmatprep.subr.bf16.mxu0 0
          %1821 = vmatpush1.bf16.msra.mxu0 0
          %1822 = vmatprep.subr.bf16.mxu0 0
          %1823 = vmatpush1.bf16.msra.mxu0 0
          %1824 = vmatprep.subr.bf16.mxu0 0
          %1825 = vmatpush1.bf16.msra.mxu0 0
          %1826 = vmatprep.subr.bf16.mxu0 0
          %1827 = vmatpush1.bf16.msra.mxu0 0
          %1828 = vmatprep.subr.bf16.mxu0 0
          %1829 = vmatpush1.bf16.msra.mxu0 0
          %1830 = vmatprep.subr.bf16.mxu0 0
          %1831 = vmatpush1.bf16.msra.mxu0 0
          %1832 = vmatprep.subr.bf16.mxu0 0
          %1833 = vmatpush1.bf16.msra.mxu0 0
          %1834 = vmatprep.subr.bf16.mxu0 0
          %1835 = vmatpush1.bf16.msra.mxu0 0
          %1836 = vmatprep.mubr.bf16.mxu0 0
          %1837 = vmatmul.mubr.bf16.gmra.mrb[0].mxu0 %v1799
          %v1838 = vpop.f32.mrb[0].mxu0
          %v1839 = vadd.f32 0.0, %v1838
          %v1840 = vpop.f32.mrb[0].mxu0
          %v1841 = vpop.f32.mrb[0].mxu0
          %v1842 = vpop.f32.mrb[0].mxu0
          %1843 = vdwg.mxu0
          %v1845 = vsel %vm1197, %v1746, 0
          %v1848 = vsel %vm1482, %v1750, 0
          %1850 = vmatprep.subr.bf16.mxu0 0
          %1851 = vmatpush1.bf16.msra.mxu0 %v1848
          %1852 = vmatprep.subr.bf16.mxu0 0
          %1853 = vmatpush1.bf16.msra.mxu0 0
          %1854 = vmatprep.subr.bf16.mxu0 0
          %1855 = vmatpush1.bf16.msra.mxu0 0
          %1856 = vmatprep.subr.bf16.mxu0 0
          %1857 = vmatpush1.bf16.msra.mxu0 0
          %1858 = vmatprep.subr.bf16.mxu0 0
          %1859 = vmatpush1.bf16.msra.mxu0 0
          %1860 = vmatprep.subr.bf16.mxu0 0
          %1861 = vmatpush1.bf16.msra.mxu0 0
          %1862 = vmatprep.subr.bf16.mxu0 0
          %1863 = vmatpush1.bf16.msra.mxu0 0
          %1864 = vmatprep.subr.bf16.mxu0 0
          %1865 = vmatpush1.bf16.msra.mxu0 0
          %1866 = vmatprep.subr.bf16.mxu0 0
          %1867 = vmatpush1.bf16.msra.mxu0 0
          %1868 = vmatprep.subr.bf16.mxu0 0
          %1869 = vmatpush1.bf16.msra.mxu0 0
          %1870 = vmatprep.subr.bf16.mxu0 0
          %1871 = vmatpush1.bf16.msra.mxu0 0
          %1872 = vmatprep.subr.bf16.mxu0 0
          %1873 = vmatpush1.bf16.msra.mxu0 0
          %1874 = vmatprep.subr.bf16.mxu0 0
          %1875 = vmatpush1.bf16.msra.mxu0 0
          %1876 = vmatprep.subr.bf16.mxu0 0
          %1877 = vmatpush1.bf16.msra.mxu0 0
          %1878 = vmatprep.subr.bf16.mxu0 0
          %1879 = vmatpush1.bf16.msra.mxu0 0
          %1880 = vmatprep.subr.bf16.mxu0 0
          %1881 = vmatpush1.bf16.msra.mxu0 0
          %1882 = vmatprep.mubr.bf16.mxu0 0
          %1883 = vmatmul.mubr.bf16.gmra.mrb[0].mxu0 %v1845
          %v1884 = vpop.f32.mrb[0].mxu0
          %v1885 = vadd.f32 0.0, %v1884
          %v1886 = vpop.f32.mrb[0].mxu0
          %v1887 = vpop.f32.mrb[0].mxu0
          %v1888 = vpop.f32.mrb[0].mxu0
          %1889 = vdwg.mxu0
          %v1891 = vsel %vm1197, %v1747, 0
          %v1894 = vsel %vm1482, %v1751, 0
          %1896 = vmatprep.subr.bf16.mxu0 0
          %1897 = vmatpush1.bf16.msra.mxu0 %v1894
          %1898 = vmatprep.subr.bf16.mxu0 0
          %1899 = vmatpush1.bf16.msra.mxu0 0
          %1900 = vmatprep.subr.bf16.mxu0 0
          %1901 = vmatpush1.bf16.msra.mxu0 0
          %1902 = vmatprep.subr.bf16.mxu0 0
          %1903 = vmatpush1.bf16.msra.mxu0 0
          %1904 = vmatprep.subr.bf16.mxu0 0
          %1905 = vmatpush1.bf16.msra.mxu0 0
          %1906 = vmatprep.subr.bf16.mxu0 0
          %1907 = vmatpush1.bf16.msra.mxu0 0
          %1908 = vmatprep.subr.bf16.mxu0 0
          %1909 = vmatpush1.bf16.msra.mxu0 0
          %1910 = vmatprep.subr.bf16.mxu0 0
          %1911 = vmatpush1.bf16.msra.mxu0 0
          %1912 = vmatprep.subr.bf16.mxu0 0
          %1913 = vmatpush1.bf16.msra.mxu0 0
          %1914 = vmatprep.subr.bf16.mxu0 0
          %1915 = vmatpush1.bf16.msra.mxu0 0
          %1916 = vmatprep.subr.bf16.mxu0 0
          %1917 = vmatpush1.bf16.msra.mxu0 0
          %1918 = vmatprep.subr.bf16.mxu0 0
          %1919 = vmatpush1.bf16.msra.mxu0 0
          %1920 = vmatprep.subr.bf16.mxu0 0
          %1921 = vmatpush1.bf16.msra.mxu0 0
          %1922 = vmatprep.subr.bf16.mxu0 0
          %1923 = vmatpush1.bf16.msra.mxu0 0
          %1924 = vmatprep.subr.bf16.mxu0 0
          %1925 = vmatpush1.bf16.msra.mxu0 0
          %1926 = vmatprep.subr.bf16.mxu0 0
          %1927 = vmatpush1.bf16.msra.mxu0 0
          %1928 = vmatprep.mubr.bf16.mxu0 0
          %1929 = vmatmul.mubr.bf16.gmra.mrb[0].mxu0 %v1891
          %v1930 = vpop.f32.mrb[0].mxu0
          %v1931 = vadd.f32 0.0, %v1930
          %v1932 = vpop.f32.mrb[0].mxu0
          %v1933 = vpop.f32.mrb[0].mxu0
          %v1934 = vpop.f32.mrb[0].mxu0
          %1935 = vdwg.mxu0
          %v1936 = vsel %vm1006, %v1793, 0.0
          %v1937 = vsel %vm1006, %v1839, 0.0
          %v1938 = vadd.f32 %v1936, %v1937
          %v1939 = vsel %vm1006, %v1885, 0.0
          %v1940 = vadd.f32 %v1938, %v1939
          %v1941 = vsel %vm1006, %v1931, 0.0
          %v1942 = vadd.f32 %v1940, %v1941
          %v1943 = vld [vmem:[#allocation24] sm:$0x1]
          %v1945 = vlaneseq
          %v1946 = vshrl.u32 %v1945, 7
          %v1947 = vsub.s32 0, %v1946
          %v1948 = vrot.slane %v1943, %v1947
          %v1950 = vadd.f32 %v1942, %v1948
          %v1951 = vadd.f32 %v1707, %v1950
          %v1952 = vld [vmem:[#allocation26] sm:$0x1]
          %v1953 = vld [vmem:[#allocation27] sm:$0x1]
          %v1954 = vsel %vm1006, %v1951, 0.0
          %1955 = vadd.xlane.f32.xlu0 %v1954
          %v1956 = vpop.xlane.xlu0 %1955
          %v1957 = vmul.f32 %v1956, %v1010
          %v1958 = vsub.f32 %v1951, %v1957
          %v1959 = vmul.f32 %v1958, %v1958
          %v1960 = vsel %vm1006, %v1959, 0.0
          %1961 = vadd.xlane.f32.xlu0 %v1960
          %v1962 = vpop.xlane.xlu0 %1961
          %v1963 = vmul.f32 %v1962, %v1010
          %v1964 = vadd.f32 %v1963, 1e-05
          %v1965 = vrsqrt.pop %v1964
          %v1966 = vmul.f32 %v1958, %v1965
          %v1968 = vlaneseq
          %v1969 = vshrl.u32 %v1968, 7
          %v1970 = vsub.s32 0, %v1969
          %v1971 = vrot.slane %v1952, %v1970
          %v1973 = vmul.f32 %v1966, %v1971
          %v1975 = vlaneseq
          %v1976 = vshrl.u32 %v1975, 7
          %v1977 = vsub.s32 0, %v1976
          %v1978 = vrot.slane %v1953, %v1977
          %v1980 = vadd.f32 %v1973, %v1978
          %v1981 = vpack.c.bf16 %v1980, %v1980
          %v1982 = vld [vmem:[#allocation29] sm:$0xf]
          %v1983 = vld [vmem:[#allocation29 + $0x4] sm:$0xf]
          %v1984 = vld [vmem:[#allocation29 + $0x8] sm:$0xf]
          %v1985 = vld [vmem:[#allocation29 + $0xc] sm:$0xf]
          %v1986 = vld [vmem:[#allocation30] sm:$0x1]
          %v1988 = vlaneseq
          %v1989 = vshrl.u32 %v1988, 7
          %v1990 = vsub.s32 0, %v1989
          %v1991 = vrot.slane %v1986, %v1990
          %v1997 = vunpack.c.l.b16 %v1982
          %v1998 = vunpack.c.l.b16 %v1983
          %v1999 = vunpack.c.l.b16 %v1984
          %v2000 = vunpack.c.l.b16 %v1985
          %v2001 = vpack.c.b16 %v1998, %v1997
          %v2002 = vpack.c.b16 %v2000, %v1999
          %v2006 = vsel %vm1006, %v1981, 0
          %2008 = vmatprep.subr.bf16.mxu0 0
          %2009 = vmatpush1.bf16.msra.mxu0 %v2001
          %2010 = vmatprep.subr.bf16.mxu0 0
          %2011 = vmatpush1.bf16.msra.mxu0 %v2002
          %2012 = vmatprep.subr.bf16.mxu0 0
          %2013 = vmatpush1.bf16.msra.mxu0 0
          %2014 = vmatprep.subr.bf16.mxu0 0
          %2015 = vmatpush1.bf16.msra.mxu0 0
          %2016 = vmatprep.subr.bf16.mxu0 0
          %2017 = vmatpush1.bf16.msra.mxu0 0
          %2018 = vmatprep.subr.bf16.mxu0 0
          %2019 = vmatpush1.bf16.msra.mxu0 0
          %2020 = vmatprep.subr.bf16.mxu0 0
          %2021 = vmatpush1.bf16.msra.mxu0 0
          %2022 = vmatprep.subr.bf16.mxu0 0
          %2023 = vmatpush1.bf16.msra.mxu0 0
          %2024 = vmatprep.subr.bf16.mxu0 0
          %2025 = vmatpush1.bf16.msra.mxu0 0
          %2026 = vmatprep.subr.bf16.mxu0 0
          %2027 = vmatpush1.bf16.msra.mxu0 0
          %2028 = vmatprep.subr.bf16.mxu0 0
          %2029 = vmatpush1.bf16.msra.mxu0 0
          %2030 = vmatprep.subr.bf16.mxu0 0
          %2031 = vmatpush1.bf16.msra.mxu0 0
          %2032 = vmatprep.subr.bf16.mxu0 0
          %2033 = vmatpush1.bf16.msra.mxu0 0
          %2034 = vmatprep.subr.bf16.mxu0 0
          %2035 = vmatpush1.bf16.msra.mxu0 0
          %2036 = vmatprep.subr.bf16.mxu0 0
          %2037 = vmatpush1.bf16.msra.mxu0 0
          %2038 = vmatprep.subr.bf16.mxu0 0
          %2039 = vmatpush1.bf16.msra.mxu0 0
          %2040 = vmatprep.mubr.bf16.mxu0 0
          %2041 = vmatmul.mubr.bf16.gmra.mrb[0].mxu0 %v2006
          %v2042 = vpop.f32.mrb[0].mxu0
          %v2043 = vadd.f32 %v1991, %v2042
          %v2044 = vpop.f32.mrb[0].mxu0
          %v2045 = vpop.f32.mrb[0].mxu0
          %v2046 = vpop.f32.mrb[0].mxu0
          %2047 = vdwg.mxu0
          %v2048 = vmax.f32 %v2043, 0.0
          %v2049 = vpack.c.bf16 %v2048, %v2048
          %v2050 = vld [vmem:[#allocation32] sm:$0xf]
          %v2051 = vld [vmem:[#allocation32 + $0x4] sm:$0xf]
          %v2052 = vld [vmem:[#allocation32 + $0x8] sm:$0xf]
          %v2053 = vld [vmem:[#allocation32 + $0xc] sm:$0xf]
          %v2054 = vld [vmem:[#allocation32 + $0x10] sm:$0xf]
          %v2055 = vld [vmem:[#allocation32 + $0x14] sm:$0xf]
          %v2056 = vld [vmem:[#allocation32 + $0x18] sm:$0xf]
          %v2057 = vld [vmem:[#allocation32 + $0x1c] sm:$0xf]
          %v2058 = vld [vmem:[#allocation33] sm:$0x1]
          %v2060 = vlaneseq
          %v2061 = vshrl.u32 %v2060, 7
          %v2062 = vsub.s32 0, %v2061
          %v2063 = vrot.slane %v2058, %v2062
          %v2073 = vunpack.c.l.b16 %v2050
          %v2074 = vunpack.c.l.b16 %v2051
          %v2075 = vunpack.c.l.b16 %v2052
          %v2076 = vunpack.c.l.b16 %v2053
          %v2077 = vunpack.c.l.b16 %v2054
          %v2078 = vunpack.c.l.b16 %v2055
          %v2079 = vunpack.c.l.b16 %v2056
          %v2080 = vunpack.c.l.b16 %v2057
          %v2081 = vpack.c.b16 %v2074, %v2073
          %v2082 = vpack.c.b16 %v2076, %v2075
          %v2083 = vpack.c.b16 %v2078, %v2077
          %v2084 = vpack.c.b16 %v2080, %v2079
          %vm2089 = vcmask 523264
          %v2091 = vsel %vm2089, %v2049, 0
          %2093 = vmatprep.subr.bf16.mxu0 0
          %2094 = vmatpush1.bf16.msra.mxu0 %v2081
          %2095 = vmatprep.subr.bf16.mxu0 0
          %2096 = vmatpush1.bf16.msra.mxu0 %v2082
          %2097 = vmatprep.subr.bf16.mxu0 0
          %2098 = vmatpush1.bf16.msra.mxu0 %v2083
          %2099 = vmatprep.subr.bf16.mxu0 0
          %2100 = vmatpush1.bf16.msra.mxu0 %v2084
          %2101 = vmatprep.subr.bf16.mxu0 0
          %2102 = vmatpush1.bf16.msra.mxu0 0
          %2103 = vmatprep.subr.bf16.mxu0 0
          %2104 = vmatpush1.bf16.msra.mxu0 0
          %2105 = vmatprep.subr.bf16.mxu0 0
          %2106 = vmatpush1.bf16.msra.mxu0 0
          %2107 = vmatprep.subr.bf16.mxu0 0
          %2108 = vmatpush1.bf16.msra.mxu0 0
          %2109 = vmatprep.subr.bf16.mxu0 0
          %2110 = vmatpush1.bf16.msra.mxu0 0
          %2111 = vmatprep.subr.bf16.mxu0 0
          %2112 = vmatpush1.bf16.msra.mxu0 0
          %2113 = vmatprep.subr.bf16.mxu0 0
          %2114 = vmatpush1.bf16.msra.mxu0 0
          %2115 = vmatprep.subr.bf16.mxu0 0
          %2116 = vmatpush1.bf16.msra.mxu0 0
          %2117 = vmatprep.subr.bf16.mxu0 0
          %2118 = vmatpush1.bf16.msra.mxu0 0
          %2119 = vmatprep.subr.bf16.mxu0 0
          %2120 = vmatpush1.bf16.msra.mxu0 0
          %2121 = vmatprep.subr.bf16.mxu0 0
          %2122 = vmatpush1.bf16.msra.mxu0 0
          %2123 = vmatprep.subr.bf16.mxu0 0
          %2124 = vmatpush1.bf16.msra.mxu0 0
          %2125 = vmatprep.mubr.bf16.mxu0 0
          %2126 = vmatmul.mubr.bf16.gmra.mrb[0].mxu0 %v2091
          %v2127 = vpop.f32.mrb[0].mxu0
          %v2128 = vadd.f32 %v2063, %v2127
          %v2129 = vpop.f32.mrb[0].mxu0
          %v2130 = vpop.f32.mrb[0].mxu0
          %v2131 = vpop.f32.mrb[0].mxu0
          %2132 = vdwg.mxu0
          %v2133 = vadd.f32 %v1951, %v2128
          %2134 = vst.msk [vmem:[%s866] sm:$0xff] %vm1006, %v2133
        $region172: #{tpu_custom_call.1} parent=91 // pred_fallthru
          _
        %s2135 = sand.u32 %s467, 1
        %s2136 = scalar_lea.sflag [#allocation8], %s2135
        %s2137 = sand.u32 %s467, 1
        %s2138 = smul.addr %s2137, 8
        %s2139 = scalar_lea.vmem [#allocation35], %s2138
        // Predicated region
        $region173: #{tpu_custom_call.1} parent=91 // pred_check
          %p2140 = pneg %p477
        $region174: #{tpu_custom_call.1} parent=91 // pred_check_branch
          %2142 = sbr.rel (%p2140) target = $region176
        $region175: #{tpu_custom_call.1} parent=91 // pred_region
          %s2144 = ssub.s32 128, 128
          %2145 = vsyncadd %s2136, %s2144
          %s2146 = sadd.s32 %s52, %s51
          %s2147 = smul.addr %s2146, 128
          %s2148 = scalar_lea.hbm %s18, %s2147
          %s2150 = sshll.u32 %s2139, 4
          %s2151 = int_to_ptr.vmem [resolvable:$true] %s2150
          %2153 = dma.vmem_to_hbm [thread:$0]  %s2151, 128, %s2148, %s2136
        $region176: #{tpu_custom_call.1} parent=91 // pred_fallthru
          _
      $region92: #{tpu_custom_call.1} parent=5 // pred_fallthru
        _
      %p2154 = scmp.le.s32.totalorder 2, %s41
      // Predicated region
      $region177: #{tpu_custom_call.1} parent=5 // pred_check
        %p2155 = pneg %p2154
      $region178: #{tpu_custom_call.1} parent=5 // pred_check_branch
        %2157 = sbr.rel (%p2155) target = $region180
      $region179: #{tpu_custom_call.1} parent=5 // pred_region
        %s2158 = ssub.s32 %s41, 2
        // Predicated region
        $region181: #{tpu_custom_call.1} parent=179 // pred_check
          %p2159 = pneg %p483
        $region182: #{tpu_custom_call.1} parent=179 // pred_check_branch
          %2161 = sbr.rel (%p2159) target = $region184
        $region183: #{tpu_custom_call.1} parent=179 // pred_region
          %s2162 = sand.u32 %s468, 1
          %s2163 = scalar_lea.sflag [#allocation8], %s2162
          %s2164 = sand.u32 %s468, 1
          %s2165 = smul.addr %s2164, 8
          %s2166 = scalar_lea.vmem [#allocation35], %s2165
          %2167 = dma.done %s2163, 128
        $region184: #{tpu_custom_call.1} parent=179 // pred_fallthru
          _
      $region180: #{tpu_custom_call.1} parent=5 // pred_fallthru
        _
    $region6: #{tpu_custom_call.1} parent=1 // loop_footer
      %s45 = sadd.s32 1, %s41
    $region7: #{tpu_custom_call.1} parent=1 // loop_footer_branch
      %40 = sbr.rel target = $region3
    $region8: #{tpu_custom_call.1} parent=1 // loop_exit
      _
    %2168 = vsyncpa [#allocation7], 1
    %s2169 = scalar_lea.sflag [#allocation7], 1
    %2170 = vsyncpa %s2169, 1
    %2171 = vsyncpa [#allocation10], 1
    %s2172 = scalar_lea.sflag [#allocation10], 1
    %2173 = vsyncpa %s2172, 1
    %2174 = vsyncpa [#allocation13], 1
    %2175 = vsyncpa [#allocation16], 1
    %2176 = vsyncpa [#allocation19], 1
    %2177 = vsyncpa [#allocation22], 1
    %2178 = vsyncpa [#allocation25], 1
    %2179 = vsyncpa [#allocation28], 1
    %2180 = vsyncpa [#allocation31], 1
    %2181 = vsyncpa [#allocation34], 1
    %2182 = vsyncpa [#allocation8], 1
    %s2183 = scalar_lea.sflag [#allocation8], 1
    %2184 = vsyncpa %s2183, 1

</llo_original>
